<compile_context>
chip_gen: v5e
topology: v5e:2x2
jax: 0.10.0
libtpu: 0.0.40
codegen_flags: <defaults>
</compile_context>

<pallas_src>
import math
import functools

import jax
import jax.numpy as jnp
from jax.experimental import pallas as pl
from jax.experimental.pallas import tpu as pltpu


def _lstm_kernel(x_ref, wx_ref, wh_hbm_ref, b_ref, fcw_ref, fcb_ref,
                 out_ref, xg_ref, wh_vmem, wh_sem, *, seq_len, batch_p, hidden):
    """Whole LSTM sequence + fc head in a single invocation.

    x_ref      : (S*Bp, Dp)  time-major, batch-padded, feature-padded input (VMEM)
    wx_ref     : (Dp, 4H)    x2h.weight^T, gate order [i, f, o, g] (VMEM)
    wh_hbm_ref : (H, 4H)     h2h.weight^T, gate order [i, f, o, g] (HBM, manual DMA)
    b_ref      : (1, 4H)     bx + bh folded, gate order [i, f, o, g] (VMEM)
    fcw_ref    : (H, Op)     fc.weight^T, lane-padded to Op=128 (VMEM)
    fcb_ref    : (1, Op)     fc.bias, lane-padded (VMEM)
    out_ref    : (Bp, Op)
    xg_ref     : VMEM scratch (S*Bp, 4H) — hoisted input projection
    wh_vmem    : VMEM scratch (H, 4H)    — DMA landing buffer for Wh
    wh_sem     : DMA semaphore
    """
    S, Bp, H = seq_len, batch_p, hidden

    # Kick off the Wh HBM->VMEM transfer so it overlaps the projection matmul.
    wh_copy = pltpu.make_async_copy(wh_hbm_ref, wh_vmem, wh_sem)
    wh_copy.start()

    # Hoisted, non-recurrent input projection: one big MXU matmul covering all
    # timesteps, with the folded bias added once.
    xg_ref[...] = (jnp.dot(x_ref[...], wx_ref[...],
                           preferred_element_type=jnp.float32)
                   + b_ref[...])

    wh_copy.wait()

    h = jnp.zeros((Bp, H), jnp.float32)
    c = jnp.zeros((Bp, H), jnp.float32)

    # Fully-unrolled recurrence: static sublane-aligned slices of xg; only the
    # recurrent h @ Wh matmul and 2 EUP issues sit on the serial path per step.
    for t in range(S):
        xg_t = xg_ref[t * Bp:(t + 1) * Bp, :]                        # (Bp, 4H)
        gates = xg_t + jnp.dot(h, wh_vmem[...],
                               preferred_element_type=jnp.float32)
        # Gate order after wrapper permutation: [i, f, o, g]
        sig = jax.nn.sigmoid(gates[:, 0:3 * H])                      # (Bp, 3H)
        g = jnp.tanh(gates[:, 3 * H:4 * H])                          # (Bp, H)
        i_ = sig[:, 0 * H:1 * H]
        f_ = sig[:, 1 * H:2 * H]
        o_ = sig[:, 2 * H:3 * H]
        c = c * f_ + i_ * g
        h = o_ * jnp.tanh(c)

    # Fused, lane-dense final fully-connected layer on the last hidden state.
    out_ref[...] = (jnp.dot(h, fcw_ref[...], preferred_element_type=jnp.float32)
                    + fcb_ref[...])


def _reorder_gates(w, axis):
    """Permute gate blocks from PyTorch order (i, f, g, o) to (i, f, o, g)."""
    i, f, g, o = jnp.split(w, 4, axis=axis)
    return jnp.concatenate([i, f, o, g], axis=axis)


def lstm_model_forward(x, wx, wh, bx, bh, fcw, fcb):
    """x: (batch, seq, input_dim) float32; weights pre-transposed to
    (in_features, out_features). Returns (batch, output_dim)."""
    B, S, D = x.shape
    H = wh.shape[0]
    O = fcw.shape[1]
    Bp = max(8, ((B + 7) // 8) * 8)            # pad batch to a sublane multiple
    Dp = max(8, ((D + 7) // 8) * 8)            # pad input features to sublanes
    Op = max(128, ((O + 127) // 128) * 128)    # pad fc output to a lane multiple

    # Wrapper-side layout plumbing: time-major, batch-padded, feature-padded,
    # flattened so the hoisted projection is one row-major matmul and every
    # per-step slice of the (S*Bp, 4H) scratch starts on a sublane boundary.
    x_sbd = jnp.transpose(x, (1, 0, 2))                             # (S, B, D)
    x_sbd = jnp.pad(x_sbd, ((0, 0), (0, Bp - B), (0, Dp - D)))      # (S, Bp, Dp)
    x_flat = x_sbd.reshape(S * Bp, Dp)

    # Gate reorder (i,f,g,o) -> (i,f,o,g) + bias fold + feature padding.
    wx_p = jnp.pad(_reorder_gates(wx, axis=1), ((0, Dp - D), (0, 0)))   # (Dp, 4H)
    wh_p = _reorder_gates(wh, axis=1)                                   # (H, 4H)
    bias = _reorder_gates(bx + bh, axis=0).reshape(1, 4 * H)            # (1, 4H)

    # Lane-dense fc head.
    fcw_p = jnp.pad(fcw, ((0, 0), (0, Op - O)))                         # (H, Op)
    fcb_p = jnp.pad(fcb, ((0, Op - O),)).reshape(1, Op)                 # (1, Op)

    kernel = functools.partial(_lstm_kernel, seq_len=S, batch_p=Bp, hidden=H)

    out_p = pl.pallas_call(
        kernel,
        out_shape=jax.ShapeDtypeStruct((Bp, Op), jnp.float32),
        grid_spec=pltpu.PrefetchScalarGridSpec(
            num_scalar_prefetch=0,
            grid=(1,),
            in_specs=[
                pl.BlockSpec((S * Bp, Dp), lambda i: (0, 0)),     # x (flattened)
                pl.BlockSpec((Dp, 4 * H), lambda i: (0, 0)),      # Wx^T [i,f,o,g]
                pl.BlockSpec(memory_space=pl.ANY),                # Wh^T (HBM, manual DMA)
                pl.BlockSpec((1, 4 * H), lambda i: (0, 0)),       # bx + bh
                pl.BlockSpec((H, Op), lambda i: (0, 0)),          # fc W^T (padded)
                pl.BlockSpec((1, Op), lambda i: (0, 0)),          # fc b (padded)
            ],
            out_specs=pl.BlockSpec((Bp, Op), lambda i: (0, 0)),
            scratch_shapes=[
                pltpu.VMEM((S * Bp, 4 * H), jnp.float32),         # hoisted x-projection
                pltpu.VMEM((H, 4 * H), jnp.float32),              # Wh landing buffer
                pltpu.SemaphoreType.DMA(()),                      # Wh DMA semaphore
            ],
        ),
        compiler_params=pltpu.CompilerParams(
            dimension_semantics=("arbitrary",),
            vmem_limit_bytes=32 * 1024 * 1024),
    )(x_flat, wx_p, wh_p, bias, fcw_p, fcb_p)

    return out_p[:B, :O]


def reference_forward(x, wx, wh, bx, bh, fcw, fcb):
    """Pure-JAX reference matching the PyTorch forward semantics."""
    B, S, D = x.shape
    H = wh.shape[0]
    h = jnp.zeros((B, H), jnp.float32)
    c = jnp.zeros((B, H), jnp.float32)
    for t in range(S):
        gates = x[:, t, :] @ wx + bx + h @ wh + bh
        i = jax.nn.sigmoid(gates[:, 0 * H:1 * H])
        f = jax.nn.sigmoid(gates[:, 1 * H:2 * H])
        g = jnp.tanh(gates[:, 2 * H:3 * H])
        o = jax.nn.sigmoid(gates[:, 3 * H:4 * H])
        c = c * f + i * g
        h = o * jnp.tanh(c)
    return h @ fcw + fcb


if __name__ == "__main__":
    # Module hyperparameters (from the PyTorch file)
    input_dim = 28
    hidden_dim = 128
    output_dim = 10

    # Small, forward-consistent example shapes
    batch = 2
    seq = 8

    key = jax.random.PRNGKey(0)
    k = jax.random.split(key, 8)

    # Deterministic parameter init (matches reset_parameters: U(-std, std), std = 1/sqrt(H))
    std = 1.0 / math.sqrt(hidden_dim)
    wx = jax.random.uniform(k[0], (input_dim, 4 * hidden_dim), jnp.float32, -std, std)   # x2h.weight^T
    wh = jax.random.uniform(k[1], (hidden_dim, 4 * hidden_dim), jnp.float32, -std, std)  # h2h.weight^T
    bx = jax.random.uniform(k[2], (4 * hidden_dim,), jnp.float32, -std, std)
    bh = jax.random.uniform(k[3], (4 * hidden_dim,), jnp.float32, -std, std)

    # fc layer (deterministic uniform init)
    fc_bound = 1.0 / math.sqrt(hidden_dim)
    fcw = jax.random.uniform(k[4], (hidden_dim, output_dim), jnp.float32, -fc_bound, fc_bound)  # fc.weight^T
    fcb = jax.random.uniform(k[5], (output_dim,), jnp.float32, -fc_bound, fc_bound)

    x = jax.random.normal(k[6], (batch, seq, input_dim), jnp.float32)

    out = lstm_model_forward(x, wx, wh, bx, bh, fcw, fcb)
    out = jax.block_until_ready(out)

    ref = reference_forward(x, wx, wh, bx, bh, fcw, fcb)
    assert out.shape == (batch, output_dim)
    assert jnp.allclose(out, ref, atol=1e-4, rtol=1e-4), "mismatch vs reference"

    print("KERNEL_OK")
</pallas_src>

<mosaic_0001>
module attributes {stable_mosaic.version = 11 : i64} {
  func.func @_lstm_kernel(%arg0: i32, %arg1: memref<64x32xf32, #tpu.memory_space<vmem>>, %arg2: memref<32x512xf32, #tpu.memory_space<vmem>>, %arg3: memref<128x512xf32, #tpu.memory_space<any>>, %arg4: memref<1x512xf32, #tpu.memory_space<vmem>>, %arg5: memref<128x128xf32, #tpu.memory_space<vmem>>, %arg6: memref<1x128xf32, #tpu.memory_space<vmem>>, %arg7: memref<8x128xf32, #tpu.memory_space<vmem>>, %arg8: memref<64x512xf32, #tpu.memory_space<vmem>>, %arg9: memref<128x512xf32, #tpu.memory_space<vmem>>, %arg10: memref<!tpu.dma_semaphore, #tpu.memory_space<semaphore_mem>>) attributes {dimension_semantics = [#tpu.dimension_semantics<arbitrary>], iteration_bounds = array<i64: 1>, scalar_prefetch = 0 : i64, scratch_operands = 3 : i64, tpu.core_type = #tpu.core_type<tc>, window_params = [{pipeline_mode = #tpu.pipeline_mode<synchronous>, transform_indices = @transform_0, window_bounds = array<i64: 64, 32>}, {pipeline_mode = #tpu.pipeline_mode<synchronous>, transform_indices = @transform_1, window_bounds = array<i64: 32, 512>}, {}, {pipeline_mode = #tpu.pipeline_mode<synchronous>, transform_indices = @transform_3, window_bounds = array<i64: 1, 512>}, {pipeline_mode = #tpu.pipeline_mode<synchronous>, transform_indices = @transform_4, window_bounds = array<i64: 128, 128>}, {pipeline_mode = #tpu.pipeline_mode<synchronous>, transform_indices = @transform_5, window_bounds = array<i64: 1, 128>}, {pipeline_mode = #tpu.pipeline_mode<synchronous>, transform_indices = @transform_6, window_bounds = array<i64: 8, 128>}]} {
    tpu.enqueue_dma source(%arg3 : memref<128x512xf32, #tpu.memory_space<any>>) target(%arg9 : memref<128x512xf32, #tpu.memory_space<vmem>>) target_semaphore(%arg10 : memref<!tpu.dma_semaphore, #tpu.memory_space<semaphore_mem>>)
    %c0 = arith.constant 0 : index
    %c0_0 = arith.constant 0 : index
    %0 = vector.load %arg1[%c0, %c0_0] : memref<64x32xf32, #tpu.memory_space<vmem>>, vector<64x32xf32>
    %c0_1 = arith.constant 0 : index
    %c0_2 = arith.constant 0 : index
    %1 = vector.load %arg2[%c0_1, %c0_2] : memref<32x512xf32, #tpu.memory_space<vmem>>, vector<32x512xf32>
    %cst = arith.constant dense<0.000000e+00> : vector<64x512xf32>
    %2 = tpu.matmul %0, %1, %cst {dimension_numbers = #tpu.dot_dimension_numbers<[1], [0], [0], [1], [0, 0, 1, 1], [], []>} : vector<64x32xf32>, vector<32x512xf32>, vector<64x512xf32> -> vector<64x512xf32>
    %c0_3 = arith.constant 0 : index
    %c0_4 = arith.constant 0 : index
    %3 = vector.load %arg4[%c0_3, %c0_4] : memref<1x512xf32, #tpu.memory_space<vmem>>, vector<1x512xf32>
    %4 = vector.broadcast %3 : vector<1x512xf32> to vector<64x512xf32>
    %5 = arith.addf %2, %4 : vector<64x512xf32>
    %c0_5 = arith.constant 0 : index
    %c0_6 = arith.constant 0 : index
    %6 = vector.load %arg8[%c0_5, %c0_6] : memref<64x512xf32, #tpu.memory_space<vmem>>, vector<64x512xf32>
    tpu.vector_store %arg8[%c0_5, %c0_6], %5 {strides = array<i32>} : memref<64x512xf32, #tpu.memory_space<vmem>>, vector<64x512xf32>,
    tpu.wait_dma2 semaphore(%arg10 : memref<!tpu.dma_semaphore, #tpu.memory_space<semaphore_mem>>) src(%arg3 : memref<128x512xf32, #tpu.memory_space<any>>) dst(%arg9 : memref<128x512xf32, #tpu.memory_space<vmem>>)
    %cst_7 = arith.constant 0.000000e+00 : f32
    %7 = vector.broadcast %cst_7 : f32 to vector<8x128xf32>
    %cst_8 = arith.constant 0.000000e+00 : f32
    %8 = vector.broadcast %cst_8 : f32 to vector<8x128xf32>
    %c0_9 = arith.constant 0 : index
    %c0_10 = arith.constant 0 : index
    %9 = vector.load %arg8[%c0_9, %c0_10] : memref<64x512xf32, #tpu.memory_space<vmem>>, vector<8x512xf32>
    %c0_11 = arith.constant 0 : index
    %c0_12 = arith.constant 0 : index
    %10 = vector.load %arg9[%c0_11, %c0_12] : memref<128x512xf32, #tpu.memory_space<vmem>>, vector<128x512xf32>
    %cst_13 = arith.constant dense<0.000000e+00> : vector<8x512xf32>
    %11 = tpu.matmul %7, %10, %cst_13 {dimension_numbers = #tpu.dot_dimension_numbers<[1], [0], [0], [1], [0, 0, 1, 1], [], []>} : vector<8x128xf32>, vector<128x512xf32>, vector<8x512xf32> -> vector<8x512xf32>
    %12 = arith.addf %9, %11 : vector<8x512xf32>
    %13 = vector.extract_strided_slice %12 {offsets = [0, 0], sizes = [8, 384], strides = [1, 1]} : vector<8x512xf32> to vector<8x384xf32>
    %14 = arith.negf %13 : vector<8x384xf32>
    %15 = math.exp %14 : vector<8x384xf32>
    %cst_14 = arith.constant 1.000000e+00 : f32
    %16 = vector.broadcast %cst_14 : f32 to vector<8x384xf32>
    %17 = arith.addf %16, %15 : vector<8x384xf32>
    %18 = arith.divf %16, %17 : vector<8x384xf32>
    %19 = vector.extract_strided_slice %12 {offsets = [0, 384], sizes = [8, 128], strides = [1, 1]} : vector<8x512xf32> to vector<8x128xf32>
    %20 = math.tanh %19 : vector<8x128xf32>
    %21 = vector.extract_strided_slice %18 {offsets = [0, 0], sizes = [8, 128], strides = [1, 1]} : vector<8x384xf32> to vector<8x128xf32>
    %22 = vector.extract_strided_slice %18 {offsets = [0, 128], sizes = [8, 128], strides = [1, 1]} : vector<8x384xf32> to vector<8x128xf32>
    %23 = vector.extract_strided_slice %18 {offsets = [0, 256], sizes = [8, 128], strides = [1, 1]} : vector<8x384xf32> to vector<8x128xf32>
    %24 = arith.mulf %8, %22 : vector<8x128xf32>
    %25 = arith.mulf %21, %20 : vector<8x128xf32>
    %26 = arith.addf %24, %25 : vector<8x128xf32>
    %27 = math.tanh %26 : vector<8x128xf32>
    %28 = arith.mulf %23, %27 : vector<8x128xf32>
    %c8 = arith.constant 8 : index
    %c0_15 = arith.constant 0 : index
    %29 = vector.load %arg8[%c8, %c0_15] : memref<64x512xf32, #tpu.memory_space<vmem>>, vector<8x512xf32>
    %c0_16 = arith.constant 0 : index
    %c0_17 = arith.constant 0 : index
    %30 = vector.load %arg9[%c0_16, %c0_17] : memref<128x512xf32, #tpu.memory_space<vmem>>, vector<128x512xf32>
    %cst_18 = arith.constant dense<0.000000e+00> : vector<8x512xf32>
    %31 = tpu.matmul %28, %30, %cst_18 {dimension_numbers = #tpu.dot_dimension_numbers<[1], [0], [0], [1], [0, 0, 1, 1], [], []>} : vector<8x128xf32>, vector<128x512xf32>, vector<8x512xf32> -> vector<8x512xf32>
    %32 = arith.addf %29, %31 : vector<8x512xf32>
    %33 = vector.extract_strided_slice %32 {offsets = [0, 0], sizes = [8, 384], strides = [1, 1]} : vector<8x512xf32> to vector<8x384xf32>
    %34 = arith.negf %33 : vector<8x384xf32>
    %35 = math.exp %34 : vector<8x384xf32>
    %cst_19 = arith.constant 1.000000e+00 : f32
    %36 = vector.broadcast %cst_19 : f32 to vector<8x384xf32>
    %37 = arith.addf %36, %35 : vector<8x384xf32>
    %38 = arith.divf %36, %37 : vector<8x384xf32>
    %39 = vector.extract_strided_slice %32 {offsets = [0, 384], sizes = [8, 128], strides = [1, 1]} : vector<8x512xf32> to vector<8x128xf32>
    %40 = math.tanh %39 : vector<8x128xf32>
    %41 = vector.extract_strided_slice %38 {offsets = [0, 0], sizes = [8, 128], strides = [1, 1]} : vector<8x384xf32> to vector<8x128xf32>
    %42 = vector.extract_strided_slice %38 {offsets = [0, 128], sizes = [8, 128], strides = [1, 1]} : vector<8x384xf32> to vector<8x128xf32>
    %43 = vector.extract_strided_slice %38 {offsets = [0, 256], sizes = [8, 128], strides = [1, 1]} : vector<8x384xf32> to vector<8x128xf32>
    %44 = arith.mulf %26, %42 : vector<8x128xf32>
    %45 = arith.mulf %41, %40 : vector<8x128xf32>
    %46 = arith.addf %44, %45 : vector<8x128xf32>
    %47 = math.tanh %46 : vector<8x128xf32>
    %48 = arith.mulf %43, %47 : vector<8x128xf32>
    %c16 = arith.constant 16 : index
    %c0_20 = arith.constant 0 : index
    %49 = vector.load %arg8[%c16, %c0_20] : memref<64x512xf32, #tpu.memory_space<vmem>>, vector<8x512xf32>
    %c0_21 = arith.constant 0 : index
    %c0_22 = arith.constant 0 : index
    %50 = vector.load %arg9[%c0_21, %c0_22] : memref<128x512xf32, #tpu.memory_space<vmem>>, vector<128x512xf32>
    %cst_23 = arith.constant dense<0.000000e+00> : vector<8x512xf32>
    %51 = tpu.matmul %48, %50, %cst_23 {dimension_numbers = #tpu.dot_dimension_numbers<[1], [0], [0], [1], [0, 0, 1, 1], [], []>} : vector<8x128xf32>, vector<128x512xf32>, vector<8x512xf32> -> vector<8x512xf32>
    %52 = arith.addf %49, %51 : vector<8x512xf32>
    %53 = vector.extract_strided_slice %52 {offsets = [0, 0], sizes = [8, 384], strides = [1, 1]} : vector<8x512xf32> to vector<8x384xf32>
    %54 = arith.negf %53 : vector<8x384xf32>
    %55 = math.exp %54 : vector<8x384xf32>
    %cst_24 = arith.constant 1.000000e+00 : f32
    %56 = vector.broadcast %cst_24 : f32 to vector<8x384xf32>
    %57 = arith.addf %56, %55 : vector<8x384xf32>
    %58 = arith.divf %56, %57 : vector<8x384xf32>
    %59 = vector.extract_strided_slice %52 {offsets = [0, 384], sizes = [8, 128], strides = [1, 1]} : vector<8x512xf32> to vector<8x128xf32>
    %60 = math.tanh %59 : vector<8x128xf32>
    %61 = vector.extract_strided_slice %58 {offsets = [0, 0], sizes = [8, 128], strides = [1, 1]} : vector<8x384xf32> to vector<8x128xf32>
    %62 = vector.extract_strided_slice %58 {offsets = [0, 128], sizes = [8, 128], strides = [1, 1]} : vector<8x384xf32> to vector<8x128xf32>
    %63 = vector.extract_strided_slice %58 {offsets = [0, 256], sizes = [8, 128], strides = [1, 1]} : vector<8x384xf32> to vector<8x128xf32>
    %64 = arith.mulf %46, %62 : vector<8x128xf32>
    %65 = arith.mulf %61, %60 : vector<8x128xf32>
    %66 = arith.addf %64, %65 : vector<8x128xf32>
    %67 = math.tanh %66 : vector<8x128xf32>
    %68 = arith.mulf %63, %67 : vector<8x128xf32>
    %c24 = arith.constant 24 : index
    %c0_25 = arith.constant 0 : index
    %69 = vector.load %arg8[%c24, %c0_25] : memref<64x512xf32, #tpu.memory_space<vmem>>, vector<8x512xf32>
    %c0_26 = arith.constant 0 : index
    %c0_27 = arith.constant 0 : index
    %70 = vector.load %arg9[%c0_26, %c0_27] : memref<128x512xf32, #tpu.memory_space<vmem>>, vector<128x512xf32>
    %cst_28 = arith.constant dense<0.000000e+00> : vector<8x512xf32>
    %71 = tpu.matmul %68, %70, %cst_28 {dimension_numbers = #tpu.dot_dimension_numbers<[1], [0], [0], [1], [0, 0, 1, 1], [], []>} : vector<8x128xf32>, vector<128x512xf32>, vector<8x512xf32> -> vector<8x512xf32>
    %72 = arith.addf %69, %71 : vector<8x512xf32>
    %73 = vector.extract_strided_slice %72 {offsets = [0, 0], sizes = [8, 384], strides = [1, 1]} : vector<8x512xf32> to vector<8x384xf32>
    %74 = arith.negf %73 : vector<8x384xf32>
    %75 = math.exp %74 : vector<8x384xf32>
    %cst_29 = arith.constant 1.000000e+00 : f32
    %76 = vector.broadcast %cst_29 : f32 to vector<8x384xf32>
    %77 = arith.addf %76, %75 : vector<8x384xf32>
    %78 = arith.divf %76, %77 : vector<8x384xf32>
    %79 = vector.extract_strided_slice %72 {offsets = [0, 384], sizes = [8, 128], strides = [1, 1]} : vector<8x512xf32> to vector<8x128xf32>
    %80 = math.tanh %79 : vector<8x128xf32>
    %81 = vector.extract_strided_slice %78 {offsets = [0, 0], sizes = [8, 128], strides = [1, 1]} : vector<8x384xf32> to vector<8x128xf32>
    %82 = vector.extract_strided_slice %78 {offsets = [0, 128], sizes = [8, 128], strides = [1, 1]} : vector<8x384xf32> to vector<8x128xf32>
    %83 = vector.extract_strided_slice %78 {offsets = [0, 256], sizes = [8, 128], strides = [1, 1]} : vector<8x384xf32> to vector<8x128xf32>
    %84 = arith.mulf %66, %82 : vector<8x128xf32>
    %85 = arith.mulf %81, %80 : vector<8x128xf32>
    %86 = arith.addf %84, %85 : vector<8x128xf32>
    %87 = math.tanh %86 : vector<8x128xf32>
    %88 = arith.mulf %83, %87 : vector<8x128xf32>
    %c32 = arith.constant 32 : index
    %c0_30 = arith.constant 0 : index
    %89 = vector.load %arg8[%c32, %c0_30] : memref<64x512xf32, #tpu.memory_space<vmem>>, vector<8x512xf32>
    %c0_31 = arith.constant 0 : index
    %c0_32 = arith.constant 0 : index
    %90 = vector.load %arg9[%c0_31, %c0_32] : memref<128x512xf32, #tpu.memory_space<vmem>>, vector<128x512xf32>
    %cst_33 = arith.constant dense<0.000000e+00> : vector<8x512xf32>
    %91 = tpu.matmul %88, %90, %cst_33 {dimension_numbers = #tpu.dot_dimension_numbers<[1], [0], [0], [1], [0, 0, 1, 1], [], []>} : vector<8x128xf32>, vector<128x512xf32>, vector<8x512xf32> -> vector<8x512xf32>
    %92 = arith.addf %89, %91 : vector<8x512xf32>
    %93 = vector.extract_strided_slice %92 {offsets = [0, 0], sizes = [8, 384], strides = [1, 1]} : vector<8x512xf32> to vector<8x384xf32>
    %94 = arith.negf %93 : vector<8x384xf32>
    %95 = math.exp %94 : vector<8x384xf32>
    %cst_34 = arith.constant 1.000000e+00 : f32
    %96 = vector.broadcast %cst_34 : f32 to vector<8x384xf32>
    %97 = arith.addf %96, %95 : vector<8x384xf32>
    %98 = arith.divf %96, %97 : vector<8x384xf32>
    %99 = vector.extract_strided_slice %92 {offsets = [0, 384], sizes = [8, 128], strides = [1, 1]} : vector<8x512xf32> to vector<8x128xf32>
    %100 = math.tanh %99 : vector<8x128xf32>
    %101 = vector.extract_strided_slice %98 {offsets = [0, 0], sizes = [8, 128], strides = [1, 1]} : vector<8x384xf32> to vector<8x128xf32>
    %102 = vector.extract_strided_slice %98 {offsets = [0, 128], sizes = [8, 128], strides = [1, 1]} : vector<8x384xf32> to vector<8x128xf32>
    %103 = vector.extract_strided_slice %98 {offsets = [0, 256], sizes = [8, 128], strides = [1, 1]} : vector<8x384xf32> to vector<8x128xf32>
    %104 = arith.mulf %86, %102 : vector<8x128xf32>
    %105 = arith.mulf %101, %100 : vector<8x128xf32>
    %106 = arith.addf %104, %105 : vector<8x128xf32>
    %107 = math.tanh %106 : vector<8x128xf32>
    %108 = arith.mulf %103, %107 : vector<8x128xf32>
    %c40 = arith.constant 40 : index
    %c0_35 = arith.constant 0 : index
    %109 = vector.load %arg8[%c40, %c0_35] : memref<64x512xf32, #tpu.memory_space<vmem>>, vector<8x512xf32>
    %c0_36 = arith.constant 0 : index
    %c0_37 = arith.constant 0 : index
    %110 = vector.load %arg9[%c0_36, %c0_37] : memref<128x512xf32, #tpu.memory_space<vmem>>, vector<128x512xf32>
    %cst_38 = arith.constant dense<0.000000e+00> : vector<8x512xf32>
    %111 = tpu.matmul %108, %110, %cst_38 {dimension_numbers = #tpu.dot_dimension_numbers<[1], [0], [0], [1], [0, 0, 1, 1], [], []>} : vector<8x128xf32>, vector<128x512xf32>, vector<8x512xf32> -> vector<8x512xf32>
    %112 = arith.addf %109, %111 : vector<8x512xf32>
    %113 = vector.extract_strided_slice %112 {offsets = [0, 0], sizes = [8, 384], strides = [1, 1]} : vector<8x512xf32> to vector<8x384xf32>
    %114 = arith.negf %113 : vector<8x384xf32>
    %115 = math.exp %114 : vector<8x384xf32>
    %cst_39 = arith.constant 1.000000e+00 : f32
    %116 = vector.broadcast %cst_39 : f32 to vector<8x384xf32>
    %117 = arith.addf %116, %115 : vector<8x384xf32>
    %118 = arith.divf %116, %117 : vector<8x384xf32>
    %119 = vector.extract_strided_slice %112 {offsets = [0, 384], sizes = [8, 128], strides = [1, 1]} : vector<8x512xf32> to vector<8x128xf32>
    %120 = math.tanh %119 : vector<8x128xf32>
    %121 = vector.extract_strided_slice %118 {offsets = [0, 0], sizes = [8, 128], strides = [1, 1]} : vector<8x384xf32> to vector<8x128xf32>
    %122 = vector.extract_strided_slice %118 {offsets = [0, 128], sizes = [8, 128], strides = [1, 1]} : vector<8x384xf32> to vector<8x128xf32>
    %123 = vector.extract_strided_slice %118 {offsets = [0, 256], sizes = [8, 128], strides = [1, 1]} : vector<8x384xf32> to vector<8x128xf32>
    %124 = arith.mulf %106, %122 : vector<8x128xf32>
    %125 = arith.mulf %121, %120 : vector<8x128xf32>
    %126 = arith.addf %124, %125 : vector<8x128xf32>
    %127 = math.tanh %126 : vector<8x128xf32>
    %128 = arith.mulf %123, %127 : vector<8x128xf32>
    %c48 = arith.constant 48 : index
    %c0_40 = arith.constant 0 : index
    %129 = vector.load %arg8[%c48, %c0_40] : memref<64x512xf32, #tpu.memory_space<vmem>>, vector<8x512xf32>
    %c0_41 = arith.constant 0 : index
    %c0_42 = arith.constant 0 : index
    %130 = vector.load %arg9[%c0_41, %c0_42] : memref<128x512xf32, #tpu.memory_space<vmem>>, vector<128x512xf32>
    %cst_43 = arith.constant dense<0.000000e+00> : vector<8x512xf32>
    %131 = tpu.matmul %128, %130, %cst_43 {dimension_numbers = #tpu.dot_dimension_numbers<[1], [0], [0], [1], [0, 0, 1, 1], [], []>} : vector<8x128xf32>, vector<128x512xf32>, vector<8x512xf32> -> vector<8x512xf32>
    %132 = arith.addf %129, %131 : vector<8x512xf32>
    %133 = vector.extract_strided_slice %132 {offsets = [0, 0], sizes = [8, 384], strides = [1, 1]} : vector<8x512xf32> to vector<8x384xf32>
    %134 = arith.negf %133 : vector<8x384xf32>
    %135 = math.exp %134 : vector<8x384xf32>
    %cst_44 = arith.constant 1.000000e+00 : f32
    %136 = vector.broadcast %cst_44 : f32 to vector<8x384xf32>
    %137 = arith.addf %136, %135 : vector<8x384xf32>
    %138 = arith.divf %136, %137 : vector<8x384xf32>
    %139 = vector.extract_strided_slice %132 {offsets = [0, 384], sizes = [8, 128], strides = [1, 1]} : vector<8x512xf32> to vector<8x128xf32>
    %140 = math.tanh %139 : vector<8x128xf32>
    %141 = vector.extract_strided_slice %138 {offsets = [0, 0], sizes = [8, 128], strides = [1, 1]} : vector<8x384xf32> to vector<8x128xf32>
    %142 = vector.extract_strided_slice %138 {offsets = [0, 128], sizes = [8, 128], strides = [1, 1]} : vector<8x384xf32> to vector<8x128xf32>
    %143 = vector.extract_strided_slice %138 {offsets = [0, 256], sizes = [8, 128], strides = [1, 1]} : vector<8x384xf32> to vector<8x128xf32>
    %144 = arith.mulf %126, %142 : vector<8x128xf32>
    %145 = arith.mulf %141, %140 : vector<8x128xf32>
    %146 = arith.addf %144, %145 : vector<8x128xf32>
    %147 = math.tanh %146 : vector<8x128xf32>
    %148 = arith.mulf %143, %147 : vector<8x128xf32>
    %c56 = arith.constant 56 : index
    %c0_45 = arith.constant 0 : index
    %149 = vector.load %arg8[%c56, %c0_45] : memref<64x512xf32, #tpu.memory_space<vmem>>, vector<8x512xf32>
    %c0_46 = arith.constant 0 : index
    %c0_47 = arith.constant 0 : index
    %150 = vector.load %arg9[%c0_46, %c0_47] : memref<128x512xf32, #tpu.memory_space<vmem>>, vector<128x512xf32>
    %cst_48 = arith.constant dense<0.000000e+00> : vector<8x512xf32>
    %151 = tpu.matmul %148, %150, %cst_48 {dimension_numbers = #tpu.dot_dimension_numbers<[1], [0], [0], [1], [0, 0, 1, 1], [], []>} : vector<8x128xf32>, vector<128x512xf32>, vector<8x512xf32> -> vector<8x512xf32>
    %152 = arith.addf %149, %151 : vector<8x512xf32>
    %153 = vector.extract_strided_slice %152 {offsets = [0, 0], sizes = [8, 384], strides = [1, 1]} : vector<8x512xf32> to vector<8x384xf32>
    %154 = arith.negf %153 : vector<8x384xf32>
    %155 = math.exp %154 : vector<8x384xf32>
    %cst_49 = arith.constant 1.000000e+00 : f32
    %156 = vector.broadcast %cst_49 : f32 to vector<8x384xf32>
    %157 = arith.addf %156, %155 : vector<8x384xf32>
    %158 = arith.divf %156, %157 : vector<8x384xf32>
    %159 = vector.extract_strided_slice %152 {offsets = [0, 384], sizes = [8, 128], strides = [1, 1]} : vector<8x512xf32> to vector<8x128xf32>
    %160 = math.tanh %159 : vector<8x128xf32>
    %161 = vector.extract_strided_slice %158 {offsets = [0, 0], sizes = [8, 128], strides = [1, 1]} : vector<8x384xf32> to vector<8x128xf32>
    %162 = vector.extract_strided_slice %158 {offsets = [0, 128], sizes = [8, 128], strides = [1, 1]} : vector<8x384xf32> to vector<8x128xf32>
    %163 = vector.extract_strided_slice %158 {offsets = [0, 256], sizes = [8, 128], strides = [1, 1]} : vector<8x384xf32> to vector<8x128xf32>
    %164 = arith.mulf %146, %162 : vector<8x128xf32>
    %165 = arith.mulf %161, %160 : vector<8x128xf32>
    %166 = arith.addf %164, %165 : vector<8x128xf32>
    %167 = math.tanh %166 : vector<8x128xf32>
    %168 = arith.mulf %163, %167 : vector<8x128xf32>
    %c0_50 = arith.constant 0 : index
    %c0_51 = arith.constant 0 : index
    %169 = vector.load %arg5[%c0_50, %c0_51] : memref<128x128xf32, #tpu.memory_space<vmem>>, vector<128x128xf32>
    %cst_52 = arith.constant dense<0.000000e+00> : vector<8x128xf32>
    %170 = tpu.matmul %168, %169, %cst_52 {dimension_numbers = #tpu.dot_dimension_numbers<[1], [0], [0], [1], [0, 0, 1, 1], [], []>} : vector<8x128xf32>, vector<128x128xf32>, vector<8x128xf32> -> vector<8x128xf32>
    %c0_53 = arith.constant 0 : index
    %c0_54 = arith.constant 0 : index
    %171 = vector.load %arg6[%c0_53, %c0_54] : memref<1x128xf32, #tpu.memory_space<vmem>>, vector<1x128xf32>
    %172 = vector.broadcast %171 : vector<1x128xf32> to vector<8x128xf32>
    %173 = arith.addf %170, %172 : vector<8x128xf32>
    %c0_55 = arith.constant 0 : index
    %c0_56 = arith.constant 0 : index
    %174 = vector.load %arg7[%c0_55, %c0_56] : memref<8x128xf32, #tpu.memory_space<vmem>>, vector<8x128xf32>
    tpu.vector_store %arg7[%c0_55, %c0_56], %173 {strides = array<i32>} : memref<8x128xf32, #tpu.memory_space<vmem>>, vector<8x128xf32>,
    return
  }
  func.func @transform_0(%arg0: i32) -> (i32, i32) {
    %c0_i32 = arith.constant 0 : i32
    %c0_i32_0 = arith.constant 0 : i32
    %c0_i32_1 = arith.constant 0 : i32
    return %c0_i32, %c0_i32_0 : i32, i32
  }
  func.func @transform_1(%arg0: i32) -> (i32, i32) {
    %c0_i32 = arith.constant 0 : i32
    %c0_i32_0 = arith.constant 0 : i32
    %c0_i32_1 = arith.constant 0 : i32
    return %c0_i32, %c0_i32_0 : i32, i32
  }
  func.func @transform_3(%arg0: i32) -> (i32, i32) {
    %c0_i32 = arith.constant 0 : i32
    %c0_i32_0 = arith.constant 0 : i32
    %c0_i32_1 = arith.constant 0 : i32
    return %c0_i32, %c0_i32_0 : i32, i32
  }
  func.func @transform_4(%arg0: i32) -> (i32, i32) {
    %c0_i32 = arith.constant 0 : i32
    %c0_i32_0 = arith.constant 0 : i32
    %c0_i32_1 = arith.constant 0 : i32
    return %c0_i32, %c0_i32_0 : i32, i32
  }
  func.func @transform_5(%arg0: i32) -> (i32, i32) {
    %c0_i32 = arith.constant 0 : i32
    %c0_i32_0 = arith.constant 0 : i32
    %c0_i32_1 = arith.constant 0 : i32
    return %c0_i32, %c0_i32_0 : i32, i32
  }
  func.func @transform_6(%arg0: i32) -> (i32, i32) {
    %c0_i32 = arith.constant 0 : i32
    %c0_i32_0 = arith.constant 0 : i32
    %c0_i32_1 = arith.constant 0 : i32
    return %c0_i32, %c0_i32_0 : i32, i32
  }
}

</mosaic_0001>

<llo_original>
// kernel: tpu_custom_call.1
$region0: #{tpu_custom_call.1}
  #allocation0 [shape = 'u32[]', space=smem, size = 0x4, offset = 0x4, fixed_abs, tag = 'smem constant byte address 0x4 - core index']
  #allocation1 [shape = 'u32[72,128]{1,0:T(1,128)}', space=vmem, size = 0x9000, scoped, tag = 'internal scratch']
  #allocation2 [shape = 'f32[64,512]{1,0:T(8,128)}', space=vmem, size = 0x20000, scoped, tag = 'scratch operand']
  #allocation3 [shape = 'f32[128,512]{1,0:T(8,128)}', space=vmem, size = 0x40000, scoped, tag = 'scratch operand']
  #allocation4 [shape = 's32[1]{0}', space=sflag, size = 0x4, scoped, tag = 'scratch operand']
  #allocation11 [shape = 's32[]', space=sflag, size = 0x4, offset = 0, fixed_abs, tag = 'sflag constant byte address 0x0 - dummy sync flag']
  #allocation12 [shape = 's32[]', space=sflag, size = 0x4, offset = 0, fixed_abs, tag = 'sflag constant byte address 0x0 - dummy sync flag']
  #allocation13 [shape = 'u32[]', space=smem, size = 0x4, offset = 0x44, fixed_abs, tag = 'smem constant byte address 0x44 - assertion arg 0']
  #allocation14 [shape = 'u32[]', space=smem, size = 0x4, offset = 0x48, fixed_abs, tag = 'smem constant byte address 0x48 - assertion arg 1']
  %s0 = inlined_call_operand.vmem [shape: f32[64,32], index: 0, kind: input, shape index: {}]
  %s1 = inlined_call_operand.hbm [shape: f32[32,512], index: 1, kind: input, shape index: {}]
  %s2 = inlined_call_operand.hbm [shape: f32[128,512], index: 2, kind: input, shape index: {}]
  %s3 = inlined_call_operand.vmem [shape: f32[1,512], index: 3, kind: input, shape index: {}]
  %s4 = inlined_call_operand.hbm [shape: f32[128,128], index: 4, kind: input, shape index: {}]
  %s5 = inlined_call_operand.vmem [shape: f32[1,128], index: 5, kind: input, shape index: {}]
  %s6 = inlined_call_operand.hbm [shape: f32[8,128], index: 6, kind: output, shape index: {}]
  %s7 = sld [smem:[#allocation0]]
  $region42: #{tpu_custom_call.1} parent=0
    _
  %s9 = ssub.s32 1, %s7
  %s10 = scalar_select 0, %s9, %s7
  $region1: #{tpu_custom_call.1} parent=0
    #allocation5 [shape = 'u8[65536]{0}', space=vmem, size = 0x10000, scoped, tag = 'input window, operand 1, single buffered']
    #allocation6 [shape = 's32[1]{0}', space=sflag, size = 0x4, scoped, tag = 'scoped memory for tpu_custom_call.1']
    #allocation7 [shape = 's32[1]{0}', space=sflag, size = 0x4, scoped, tag = 'scoped memory for tpu_custom_call.1']
    #allocation8 [shape = 'u8[65536]{0}', space=vmem, size = 0x10000, scoped, tag = 'input window, operand 4, single buffered']
    #allocation9 [shape = 's32[1]{0}', space=sflag, size = 0x4, scoped, tag = 'scoped memory for tpu_custom_call.1']
    #allocation10 [shape = 'u8[4096]{0}', space=vmem, size = 0x1000, scoped, tag = 'output window, operand 0, single buffered']
    %11 = vsyncpa [#allocation6], 0
    %12 = vsyncpa [#allocation9], 0
    %13 = vsyncpa [#allocation7], 0
    // Predicated region
    $region2: #{tpu_custom_call.1} parent=1 // pred_check
      _
    $region3: #{tpu_custom_call.1} parent=1 // pred_check_branch
      %15 = sbr.rel (0) target = $region5
    $region4: #{tpu_custom_call.1} parent=1 // pred_region
      _
    $region5: #{tpu_custom_call.1} parent=1 // pred_fallthru
      _
    // Predicated region
    $region6: #{tpu_custom_call.1} parent=1 // pred_check
      _
    $region7: #{tpu_custom_call.1} parent=1 // pred_check_branch
      %17 = sbr.rel (0) target = $region9
    $region8: #{tpu_custom_call.1} parent=1 // pred_region
      %19 = vsyncadd [#allocation6], 0
      %s20 = sshll.u32 %s1, 4
      %s21 = int_to_ptr.hbm [resolvable:$true] %s20
      %s22 = sshll.u32 [#allocation5], 4
      %s23 = int_to_ptr.vmem [resolvable:$true] %s22
      %28 = dma.hbm_to_vmem [thread:$0]  %s21, 2048, %s23, [#allocation6], 512, 512, 32
    $region9: #{tpu_custom_call.1} parent=1 // pred_fallthru
      _
    // Predicated region
    $region10: #{tpu_custom_call.1} parent=1 // pred_check
      _
    $region11: #{tpu_custom_call.1} parent=1 // pred_check_branch
      %30 = sbr.rel (0) target = $region13
    $region12: #{tpu_custom_call.1} parent=1 // pred_region
      _
    $region13: #{tpu_custom_call.1} parent=1 // pred_fallthru
      _
    // Predicated region
    $region14: #{tpu_custom_call.1} parent=1 // pred_check
      _
    $region15: #{tpu_custom_call.1} parent=1 // pred_check_branch
      %32 = sbr.rel (0) target = $region17
    $region16: #{tpu_custom_call.1} parent=1 // pred_region
      %34 = vsyncadd [#allocation9], 0
      %s35 = sshll.u32 %s4, 4
      %s36 = int_to_ptr.hbm [resolvable:$true] %s35
      %s37 = sshll.u32 [#allocation8], 4
      %s38 = int_to_ptr.vmem [resolvable:$true] %s37
      %43 = dma.hbm_to_vmem [thread:$0]  %s36, 2048, %s38, [#allocation9], 128, 128, 8
    $region17: #{tpu_custom_call.1} parent=1 // pred_fallthru
      _
    // Predicated region
    $region18: #{tpu_custom_call.1} parent=1 // pred_check
      _
    $region19: #{tpu_custom_call.1} parent=1 // pred_check_branch
      %45 = sbr.rel (0) target = $region21
    $region20: #{tpu_custom_call.1} parent=1 // pred_region
      _
    $region21: #{tpu_custom_call.1} parent=1 // pred_fallthru
      _
    // Predicated region
    $region22: #{tpu_custom_call.1} parent=1 // pred_check
      _
    $region23: #{tpu_custom_call.1} parent=1 // pred_check_branch
      %47 = sbr.rel (0) target = $region25
    $region24: #{tpu_custom_call.1} parent=1 // pred_region
      %49 = dma.done [#allocation6], 2048
    $region25: #{tpu_custom_call.1} parent=1 // pred_fallthru
      _
    // Predicated region
    $region26: #{tpu_custom_call.1} parent=1 // pred_check
      _
    $region27: #{tpu_custom_call.1} parent=1 // pred_check_branch
      %51 = sbr.rel (0) target = $region29
    $region28: #{tpu_custom_call.1} parent=1 // pred_region
      %53 = dma.done [#allocation9], 2048
    $region29: #{tpu_custom_call.1} parent=1 // pred_fallthru
      _
    // Predicated region
    $region30: #{tpu_custom_call.1} parent=1 // pred_check
      _
    $region31: #{tpu_custom_call.1} parent=1 // pred_check_branch
      %55 = sbr.rel target = $region33
    $region32: #{tpu_custom_call.1} parent=1 // pred_region
      %56 = sst [smem:[#allocation13]] [#allocation12]
      %57 = sst [smem:[#allocation14]] [#allocation11]
    $region33: #{tpu_custom_call.1} parent=1 // pred_fallthru
      _
    %59 = shalt.err (0)
    %s61 = sshll.u32 %s2, 4
    %s62 = int_to_ptr.hbm [resolvable:$true] %s61
    %s63 = sshll.u32 [#allocation3], 4
    %s64 = int_to_ptr.vmem [resolvable:$true] %s63
    %66 = dma.hbm_to_vmem [thread:$0]  %s62, 8192, %s64, [#allocation4]
    %v67 = vld [vmem:[%s0] sm:$0xff]
    %v68 = vld [vmem:[%s0 + $0x8] sm:$0xff]
    %v69 = vld [vmem:[%s0 + $0x10] sm:$0xff]
    %v70 = vld [vmem:[%s0 + $0x18] sm:$0xff]
    %v71 = vld [vmem:[%s0 + $0x20] sm:$0xff]
    %v72 = vld [vmem:[%s0 + $0x28] sm:$0xff]
    %v73 = vld [vmem:[%s0 + $0x30] sm:$0xff]
    %v74 = vld [vmem:[%s0 + $0x38] sm:$0xff]
    %v75 = vld [vmem:[#allocation5] sm:$0xff]
    %v76 = vld [vmem:[#allocation5 + $0x8] sm:$0xff]
    %v77 = vld [vmem:[#allocation5 + $0x10] sm:$0xff]
    %v78 = vld [vmem:[#allocation5 + $0x18] sm:$0xff]
    %v79 = vld [vmem:[#allocation5 + $0x20] sm:$0xff]
    %v80 = vld [vmem:[#allocation5 + $0x28] sm:$0xff]
    %v81 = vld [vmem:[#allocation5 + $0x30] sm:$0xff]
    %v82 = vld [vmem:[#allocation5 + $0x38] sm:$0xff]
    %v83 = vld [vmem:[#allocation5 + $0x40] sm:$0xff]
    %v84 = vld [vmem:[#allocation5 + $0x48] sm:$0xff]
    %v85 = vld [vmem:[#allocation5 + $0x50] sm:$0xff]
    %v86 = vld [vmem:[#allocation5 + $0x58] sm:$0xff]
    %v87 = vld [vmem:[#allocation5 + $0x60] sm:$0xff]
    %v88 = vld [vmem:[#allocation5 + $0x68] sm:$0xff]
    %v89 = vld [vmem:[#allocation5 + $0x70] sm:$0xff]
    %v90 = vld [vmem:[#allocation5 + $0x78] sm:$0xff]
    %v91 = vld [vmem:[%s3] sm:$0xf]
    %v93 = vperm.slane %v91, 0
    %v94 = vperm.slane %v91, 1
    %v95 = vperm.slane %v91, 2
    %v96 = vperm.slane %v91, 3
    %vm101 = vcmask 261120
    %v103 = vsel %vm101, %v67, 0
    %v106 = vsel %vm101, %v68, 0
    %v109 = vsel %vm101, %v69, 0
    %v112 = vsel %vm101, %v70, 0
    %v115 = vsel %vm101, %v71, 0
    %v118 = vsel %vm101, %v72, 0
    %v121 = vsel %vm101, %v73, 0
    %v124 = vsel %vm101, %v74, 0
    %126 = vmatpush.msra.mxu0 0.0
    %127 = vmatpush.msra.mxu0 0.0
    %128 = vmatpush.msra.mxu0 0.0
    %129 = vmatpush.msra.mxu0 0.0
    %130 = vmatpush.msra.mxu0 0.0
    %131 = vmatpush.msra.mxu0 0.0
    %132 = vmatpush.msra.mxu0 0.0
    %133 = vmatpush.msra.mxu0 0.0
    %134 = vmatpush.msra.mxu0 0.0
    %135 = vmatpush.msra.mxu0 0.0
    %136 = vmatpush.msra.mxu0 0.0
    %137 = vmatpush.msra.mxu0 0.0
    %138 = vmatpush.msra.mxu0 %v87
    %139 = vmatpush.msra.mxu0 %v83
    %140 = vmatpush.msra.mxu0 %v79
    %141 = vmatpush.msra.mxu0 %v75
    %142 = vmatmul.f32.gmra.mxu0 %v103
    %v143 = vpop.f32.mrf.mxu0
    %v144 = vadd.f32 %v93, %v143
    %145 = vmatmul.f32.gmra.mxu0 %v106
    %v146 = vpop.f32.mrf.mxu0
    %v147 = vadd.f32 %v93, %v146
    %148 = vmatmul.f32.gmra.mxu0 %v109
    %v149 = vpop.f32.mrf.mxu0
    %v150 = vadd.f32 %v93, %v149
    %151 = vmatmul.f32.gmra.mxu0 %v112
    %v152 = vpop.f32.mrf.mxu0
    %v153 = vadd.f32 %v93, %v152
    %154 = vmatmul.f32.gmra.mxu0 %v115
    %v155 = vpop.f32.mrf.mxu0
    %v156 = vadd.f32 %v93, %v155
    %157 = vmatmul.f32.gmra.mxu0 %v118
    %v158 = vpop.f32.mrf.mxu0
    %v159 = vadd.f32 %v93, %v158
    %160 = vmatmul.f32.gmra.mxu0 %v121
    %v161 = vpop.f32.mrf.mxu0
    %v162 = vadd.f32 %v93, %v161
    %163 = vmatmul.f32.gmra.mxu0 %v124
    %v164 = vpop.f32.mrf.mxu0
    %v165 = vadd.f32 %v93, %v164
    %166 = vdwg.mxu0
    %167 = vmatpush.msra.mxu0 0.0
    %168 = vmatpush.msra.mxu0 0.0
    %169 = vmatpush.msra.mxu0 0.0
    %170 = vmatpush.msra.mxu0 0.0
    %171 = vmatpush.msra.mxu0 0.0
    %172 = vmatpush.msra.mxu0 0.0
    %173 = vmatpush.msra.mxu0 0.0
    %174 = vmatpush.msra.mxu0 0.0
    %175 = vmatpush.msra.mxu0 0.0
    %176 = vmatpush.msra.mxu0 0.0
    %177 = vmatpush.msra.mxu0 0.0
    %178 = vmatpush.msra.mxu0 0.0
    %179 = vmatpush.msra.mxu0 %v88
    %180 = vmatpush.msra.mxu0 %v84
    %181 = vmatpush.msra.mxu0 %v80
    %182 = vmatpush.msra.mxu0 %v76
    %183 = vmatmul.f32.gmra.mxu0 %v103
    %v184 = vpop.f32.mrf.mxu0
    %v185 = vadd.f32 %v94, %v184
    %186 = vmatmul.f32.gmra.mxu0 %v106
    %v187 = vpop.f32.mrf.mxu0
    %v188 = vadd.f32 %v94, %v187
    %189 = vmatmul.f32.gmra.mxu0 %v109
    %v190 = vpop.f32.mrf.mxu0
    %v191 = vadd.f32 %v94, %v190
    %192 = vmatmul.f32.gmra.mxu0 %v112
    %v193 = vpop.f32.mrf.mxu0
    %v194 = vadd.f32 %v94, %v193
    %195 = vmatmul.f32.gmra.mxu0 %v115
    %v196 = vpop.f32.mrf.mxu0
    %v197 = vadd.f32 %v94, %v196
    %198 = vmatmul.f32.gmra.mxu0 %v118
    %v199 = vpop.f32.mrf.mxu0
    %v200 = vadd.f32 %v94, %v199
    %201 = vmatmul.f32.gmra.mxu0 %v121
    %v202 = vpop.f32.mrf.mxu0
    %v203 = vadd.f32 %v94, %v202
    %204 = vmatmul.f32.gmra.mxu0 %v124
    %v205 = vpop.f32.mrf.mxu0
    %v206 = vadd.f32 %v94, %v205
    %207 = vdwg.mxu0
    %208 = vmatpush.msra.mxu0 0.0
    %209 = vmatpush.msra.mxu0 0.0
    %210 = vmatpush.msra.mxu0 0.0
    %211 = vmatpush.msra.mxu0 0.0
    %212 = vmatpush.msra.mxu0 0.0
    %213 = vmatpush.msra.mxu0 0.0
    %214 = vmatpush.msra.mxu0 0.0
    %215 = vmatpush.msra.mxu0 0.0
    %216 = vmatpush.msra.mxu0 0.0
    %217 = vmatpush.msra.mxu0 0.0
    %218 = vmatpush.msra.mxu0 0.0
    %219 = vmatpush.msra.mxu0 0.0
    %220 = vmatpush.msra.mxu0 %v89
    %221 = vmatpush.msra.mxu0 %v85
    %222 = vmatpush.msra.mxu0 %v81
    %223 = vmatpush.msra.mxu0 %v77
    %224 = vmatmul.f32.gmra.mxu0 %v103
    %v225 = vpop.f32.mrf.mxu0
    %v226 = vadd.f32 %v95, %v225
    %227 = vmatmul.f32.gmra.mxu0 %v106
    %v228 = vpop.f32.mrf.mxu0
    %v229 = vadd.f32 %v95, %v228
    %230 = vmatmul.f32.gmra.mxu0 %v109
    %v231 = vpop.f32.mrf.mxu0
    %v232 = vadd.f32 %v95, %v231
    %233 = vmatmul.f32.gmra.mxu0 %v112
    %v234 = vpop.f32.mrf.mxu0
    %v235 = vadd.f32 %v95, %v234
    %236 = vmatmul.f32.gmra.mxu0 %v115
    %v237 = vpop.f32.mrf.mxu0
    %v238 = vadd.f32 %v95, %v237
    %239 = vmatmul.f32.gmra.mxu0 %v118
    %v240 = vpop.f32.mrf.mxu0
    %v241 = vadd.f32 %v95, %v240
    %242 = vmatmul.f32.gmra.mxu0 %v121
    %v243 = vpop.f32.mrf.mxu0
    %v244 = vadd.f32 %v95, %v243
    %245 = vmatmul.f32.gmra.mxu0 %v124
    %v246 = vpop.f32.mrf.mxu0
    %v247 = vadd.f32 %v95, %v246
    %248 = vdwg.mxu0
    %249 = vmatpush.msra.mxu0 0.0
    %250 = vmatpush.msra.mxu0 0.0
    %251 = vmatpush.msra.mxu0 0.0
    %252 = vmatpush.msra.mxu0 0.0
    %253 = vmatpush.msra.mxu0 0.0
    %254 = vmatpush.msra.mxu0 0.0
    %255 = vmatpush.msra.mxu0 0.0
    %256 = vmatpush.msra.mxu0 0.0
    %257 = vmatpush.msra.mxu0 0.0
    %258 = vmatpush.msra.mxu0 0.0
    %259 = vmatpush.msra.mxu0 0.0
    %260 = vmatpush.msra.mxu0 0.0
    %261 = vmatpush.msra.mxu0 %v90
    %262 = vmatpush.msra.mxu0 %v86
    %263 = vmatpush.msra.mxu0 %v82
    %264 = vmatpush.msra.mxu0 %v78
    %265 = vmatmul.f32.gmra.mxu0 %v103
    %v266 = vpop.f32.mrf.mxu0
    %v267 = vadd.f32 %v96, %v266
    %268 = vmatmul.f32.gmra.mxu0 %v106
    %v269 = vpop.f32.mrf.mxu0
    %v270 = vadd.f32 %v96, %v269
    %271 = vmatmul.f32.gmra.mxu0 %v109
    %v272 = vpop.f32.mrf.mxu0
    %v273 = vadd.f32 %v96, %v272
    %274 = vmatmul.f32.gmra.mxu0 %v112
    %v275 = vpop.f32.mrf.mxu0
    %v276 = vadd.f32 %v96, %v275
    %277 = vmatmul.f32.gmra.mxu0 %v115
    %v278 = vpop.f32.mrf.mxu0
    %v279 = vadd.f32 %v96, %v278
    %280 = vmatmul.f32.gmra.mxu0 %v118
    %v281 = vpop.f32.mrf.mxu0
    %v282 = vadd.f32 %v96, %v281
    %283 = vmatmul.f32.gmra.mxu0 %v121
    %v284 = vpop.f32.mrf.mxu0
    %v285 = vadd.f32 %v96, %v284
    %286 = vmatmul.f32.gmra.mxu0 %v124
    %v287 = vpop.f32.mrf.mxu0
    %v288 = vadd.f32 %v96, %v287
    %289 = vdwg.mxu0
    %290 = vst [vmem:[#allocation2] sm:$0xff] %v144
    %291 = vst [vmem:[#allocation2 + $0x8] sm:$0xff] %v185
    %292 = vst [vmem:[#allocation2 + $0x10] sm:$0xff] %v226
    %293 = vst [vmem:[#allocation2 + $0x18] sm:$0xff] %v267
    %294 = vst [vmem:[#allocation2 + $0x20] sm:$0xff] %v147
    %295 = vst [vmem:[#allocation2 + $0x28] sm:$0xff] %v188
    %296 = vst [vmem:[#allocation2 + $0x30] sm:$0xff] %v229
    %297 = vst [vmem:[#allocation2 + $0x38] sm:$0xff] %v270
    %298 = vst [vmem:[#allocation2 + $0x40] sm:$0xff] %v150
    %299 = vst [vmem:[#allocation2 + $0x48] sm:$0xff] %v191
    %300 = vst [vmem:[#allocation2 + $0x50] sm:$0xff] %v232
    %301 = vst [vmem:[#allocation2 + $0x58] sm:$0xff] %v273
    %302 = vst [vmem:[#allocation2 + $0x60] sm:$0xff] %v153
    %303 = vst [vmem:[#allocation2 + $0x68] sm:$0xff] %v194
    %304 = vst [vmem:[#allocation2 + $0x70] sm:$0xff] %v235
    %305 = vst [vmem:[#allocation2 + $0x78] sm:$0xff] %v276
    %306 = vst [vmem:[#allocation2 + $0x80] sm:$0xff] %v156
    %307 = vst [vmem:[#allocation2 + $0x88] sm:$0xff] %v197
    %308 = vst [vmem:[#allocation2 + $0x90] sm:$0xff] %v238
    %309 = vst [vmem:[#allocation2 + $0x98] sm:$0xff] %v279
    %310 = vst [vmem:[#allocation2 + $0xa0] sm:$0xff] %v159
    %311 = vst [vmem:[#allocation2 + $0xa8] sm:$0xff] %v200
    %312 = vst [vmem:[#allocation2 + $0xb0] sm:$0xff] %v241
    %313 = vst [vmem:[#allocation2 + $0xb8] sm:$0xff] %v282
    %314 = vst [vmem:[#allocation2 + $0xc0] sm:$0xff] %v162
    %315 = vst [vmem:[#allocation2 + $0xc8] sm:$0xff] %v203
    %316 = vst [vmem:[#allocation2 + $0xd0] sm:$0xff] %v244
    %317 = vst [vmem:[#allocation2 + $0xd8] sm:$0xff] %v285
    %318 = vst [vmem:[#allocation2 + $0xe0] sm:$0xff] %v165
    %319 = vst [vmem:[#allocation2 + $0xe8] sm:$0xff] %v206
    %320 = vst [vmem:[#allocation2 + $0xf0] sm:$0xff] %v247
    %321 = vst [vmem:[#allocation2 + $0xf8] sm:$0xff] %v288
    %s322 = smul.u32 8, 16
    %s323 = smul.u32 %s322, 4
    %s324 = sshll.u32 %s323, 4
    %325 = dma.done [#allocation4], %s324
    %v326 = vld [vmem:[#allocation2] sm:$0xff]
    %v327 = vld [vmem:[#allocation2 + $0x8] sm:$0xff]
    %v328 = vld [vmem:[#allocation2 + $0x10] sm:$0xff]
    %v329 = vld [vmem:[#allocation2 + $0x18] sm:$0xff]
    %v330 = vld [vmem:[#allocation3] sm:$0xff]
    %v331 = vld [vmem:[#allocation3 + $0x8] sm:$0xff]
    %v332 = vld [vmem:[#allocation3 + $0x10] sm:$0xff]
    %v333 = vld [vmem:[#allocation3 + $0x18] sm:$0xff]
    %v334 = vld [vmem:[#allocation3 + $0x20] sm:$0xff]
    %v335 = vld [vmem:[#allocation3 + $0x28] sm:$0xff]
    %v336 = vld [vmem:[#allocation3 + $0x30] sm:$0xff]
    %v337 = vld [vmem:[#allocation3 + $0x38] sm:$0xff]
    %v338 = vld [vmem:[#allocation3 + $0x40] sm:$0xff]
    %v339 = vld [vmem:[#allocation3 + $0x48] sm:$0xff]
    %v340 = vld [vmem:[#allocation3 + $0x50] sm:$0xff]
    %v341 = vld [vmem:[#allocation3 + $0x58] sm:$0xff]
    %v342 = vld [vmem:[#allocation3 + $0x60] sm:$0xff]
    %v343 = vld [vmem:[#allocation3 + $0x68] sm:$0xff]
    %v344 = vld [vmem:[#allocation3 + $0x70] sm:$0xff]
    %v345 = vld [vmem:[#allocation3 + $0x78] sm:$0xff]
    %v346 = vld [vmem:[#allocation3 + $0x80] sm:$0xff]
    %v347 = vld [vmem:[#allocation3 + $0x88] sm:$0xff]
    %v348 = vld [vmem:[#allocation3 + $0x90] sm:$0xff]
    %v349 = vld [vmem:[#allocation3 + $0x98] sm:$0xff]
    %v350 = vld [vmem:[#allocation3 + $0xa0] sm:$0xff]
    %v351 = vld [vmem:[#allocation3 + $0xa8] sm:$0xff]
    %v352 = vld [vmem:[#allocation3 + $0xb0] sm:$0xff]
    %v353 = vld [vmem:[#allocation3 + $0xb8] sm:$0xff]
    %v354 = vld [vmem:[#allocation3 + $0xc0] sm:$0xff]
    %v355 = vld [vmem:[#allocation3 + $0xc8] sm:$0xff]
    %v356 = vld [vmem:[#allocation3 + $0xd0] sm:$0xff]
    %v357 = vld [vmem:[#allocation3 + $0xd8] sm:$0xff]
    %v358 = vld [vmem:[#allocation3 + $0xe0] sm:$0xff]
    %v359 = vld [vmem:[#allocation3 + $0xe8] sm:$0xff]
    %v360 = vld [vmem:[#allocation3 + $0xf0] sm:$0xff]
    %v361 = vld [vmem:[#allocation3 + $0xf8] sm:$0xff]
    %v362 = vld [vmem:[#allocation3 + $0x100] sm:$0xff]
    %v363 = vld [vmem:[#allocation3 + $0x108] sm:$0xff]
    %v364 = vld [vmem:[#allocation3 + $0x110] sm:$0xff]
    %v365 = vld [vmem:[#allocation3 + $0x118] sm:$0xff]
    %v366 = vld [vmem:[#allocation3 + $0x120] sm:$0xff]
    %v367 = vld [vmem:[#allocation3 + $0x128] sm:$0xff]
    %v368 = vld [vmem:[#allocation3 + $0x130] sm:$0xff]
    %v369 = vld [vmem:[#allocation3 + $0x138] sm:$0xff]
    %v370 = vld [vmem:[#allocation3 + $0x140] sm:$0xff]
    %v371 = vld [vmem:[#allocation3 + $0x148] sm:$0xff]
    %v372 = vld [vmem:[#allocation3 + $0x150] sm:$0xff]
    %v373 = vld [vmem:[#allocation3 + $0x158] sm:$0xff]
    %v374 = vld [vmem:[#allocation3 + $0x160] sm:$0xff]
    %v375 = vld [vmem:[#allocation3 + $0x168] sm:$0xff]
    %v376 = vld [vmem:[#allocation3 + $0x170] sm:$0xff]
    %v377 = vld [vmem:[#allocation3 + $0x178] sm:$0xff]
    %v378 = vld [vmem:[#allocation3 + $0x180] sm:$0xff]
    %v379 = vld [vmem:[#allocation3 + $0x188] sm:$0xff]
    %v380 = vld [vmem:[#allocation3 + $0x190] sm:$0xff]
    %v381 = vld [vmem:[#allocation3 + $0x198] sm:$0xff]
    %v382 = vld [vmem:[#allocation3 + $0x1a0] sm:$0xff]
    %v383 = vld [vmem:[#allocation3 + $0x1a8] sm:$0xff]
    %v384 = vld [vmem:[#allocation3 + $0x1b0] sm:$0xff]
    %v385 = vld [vmem:[#allocation3 + $0x1b8] sm:$0xff]
    %v386 = vld [vmem:[#allocation3 + $0x1c0] sm:$0xff]
    %v387 = vld [vmem:[#allocation3 + $0x1c8] sm:$0xff]
    %v388 = vld [vmem:[#allocation3 + $0x1d0] sm:$0xff]
    %v389 = vld [vmem:[#allocation3 + $0x1d8] sm:$0xff]
    %v390 = vld [vmem:[#allocation3 + $0x1e0] sm:$0xff]
    %v391 = vld [vmem:[#allocation3 + $0x1e8] sm:$0xff]
    %v392 = vld [vmem:[#allocation3 + $0x1f0] sm:$0xff]
    %v393 = vld [vmem:[#allocation3 + $0x1f8] sm:$0xff]
    %394 = vmatpush.msra.mxu0 %v390
    %395 = vmatpush.msra.mxu0 %v386
    %396 = vmatpush.msra.mxu0 %v382
    %397 = vmatpush.msra.mxu0 %v378
    %398 = vmatpush.msra.mxu0 %v374
    %399 = vmatpush.msra.mxu0 %v370
    %400 = vmatpush.msra.mxu0 %v366
    %401 = vmatpush.msra.mxu0 %v362
    %402 = vmatpush.msra.mxu0 %v358
    %403 = vmatpush.msra.mxu0 %v354
    %404 = vmatpush.msra.mxu0 %v350
    %405 = vmatpush.msra.mxu0 %v346
    %406 = vmatpush.msra.mxu0 %v342
    %407 = vmatpush.msra.mxu0 %v338
    %408 = vmatpush.msra.mxu0 %v334
    %409 = vmatpush.msra.mxu0 %v330
    %410 = vmatmul.f32.gmra.mxu0 0.0
    %v411 = vpop.f32.mrf.mxu0
    %v412 = vadd.f32 0.0, %v411
    %413 = vdwg.mxu0
    %414 = vmatpush.msra.mxu0 %v391
    %415 = vmatpush.msra.mxu0 %v387
    %416 = vmatpush.msra.mxu0 %v383
    %417 = vmatpush.msra.mxu0 %v379
    %418 = vmatpush.msra.mxu0 %v375
    %419 = vmatpush.msra.mxu0 %v371
    %420 = vmatpush.msra.mxu0 %v367
    %421 = vmatpush.msra.mxu0 %v363
    %422 = vmatpush.msra.mxu0 %v359
    %423 = vmatpush.msra.mxu0 %v355
    %424 = vmatpush.msra.mxu0 %v351
    %425 = vmatpush.msra.mxu0 %v347
    %426 = vmatpush.msra.mxu0 %v343
    %427 = vmatpush.msra.mxu0 %v339
    %428 = vmatpush.msra.mxu0 %v335
    %429 = vmatpush.msra.mxu0 %v331
    %430 = vmatmul.f32.gmra.mxu0 0.0
    %v431 = vpop.f32.mrf.mxu0
    %v432 = vadd.f32 0.0, %v431
    %433 = vdwg.mxu0
    %434 = vmatpush.msra.mxu0 %v392
    %435 = vmatpush.msra.mxu0 %v388
    %436 = vmatpush.msra.mxu0 %v384
    %437 = vmatpush.msra.mxu0 %v380
    %438 = vmatpush.msra.mxu0 %v376
    %439 = vmatpush.msra.mxu0 %v372
    %440 = vmatpush.msra.mxu0 %v368
    %441 = vmatpush.msra.mxu0 %v364
    %442 = vmatpush.msra.mxu0 %v360
    %443 = vmatpush.msra.mxu0 %v356
    %444 = vmatpush.msra.mxu0 %v352
    %445 = vmatpush.msra.mxu0 %v348
    %446 = vmatpush.msra.mxu0 %v344
    %447 = vmatpush.msra.mxu0 %v340
    %448 = vmatpush.msra.mxu0 %v336
    %449 = vmatpush.msra.mxu0 %v332
    %450 = vmatmul.f32.gmra.mxu0 0.0
    %v451 = vpop.f32.mrf.mxu0
    %v452 = vadd.f32 0.0, %v451
    %453 = vdwg.mxu0
    %454 = vmatpush.msra.mxu0 %v393
    %455 = vmatpush.msra.mxu0 %v389
    %456 = vmatpush.msra.mxu0 %v385
    %457 = vmatpush.msra.mxu0 %v381
    %458 = vmatpush.msra.mxu0 %v377
    %459 = vmatpush.msra.mxu0 %v373
    %460 = vmatpush.msra.mxu0 %v369
    %461 = vmatpush.msra.mxu0 %v365
    %462 = vmatpush.msra.mxu0 %v361
    %463 = vmatpush.msra.mxu0 %v357
    %464 = vmatpush.msra.mxu0 %v353
    %465 = vmatpush.msra.mxu0 %v349
    %466 = vmatpush.msra.mxu0 %v345
    %467 = vmatpush.msra.mxu0 %v341
    %468 = vmatpush.msra.mxu0 %v337
    %469 = vmatpush.msra.mxu0 %v333
    %470 = vmatmul.f32.gmra.mxu0 0.0
    %v471 = vpop.f32.mrf.mxu0
    %v472 = vadd.f32 0.0, %v471
    %473 = vdwg.mxu0
    %v474 = vadd.f32 %v326, %v412
    %v475 = vadd.f32 %v327, %v432
    %v476 = vadd.f32 %v328, %v452
    %v477 = vadd.f32 %v329, %v472
    %v478 = vxor.u32 %v474, 2147483648
    %v479 = vxor.u32 %v475, 2147483648
    %v480 = vxor.u32 %v476, 2147483648
    %v481 = vmul.f32 %v478, 1.442695
    %v482 = vpow.pop %v481
    %v483 = vmul.f32 %v479, 1.442695
    %v484 = vpow.pop %v483
    %v485 = vmul.f32 %v480, 1.442695
    %v486 = vpow.pop %v485
    %v487 = vadd.f32 %v482, 1.0
    %v488 = vadd.f32 %v484, 1.0
    %v489 = vadd.f32 %v486, 1.0
    %v490 = vrcp.pop %v487
    %v491 = vmul.f32 %v487, %v490
    %v492 = vsub.f32 1.0, %v491
    %v493 = vmul.f32 %v490, %v492
    %v494 = vadd.f32 %v490, %v493
    %vm495 = vweird.f32 %v487
    %vm496 = vweird.f32 %v490
    %vm497 = vmor %vm495, %vm496
    %v498 = vsel %vm497, %v490, %v494
    %v499 = vand.u32 2147483647, %v487
    %vm500 = vcmp.eq.f32.partialorder %v499, 8.507059e+37
    %v501 = vand.u32 %v487, 2147483648
    %v502 = vor.u32 1.1754944e-38, %v501
    %v503 = vsel %vm500, %v502, %v498
    %v504 = vmul.f32 1.0, %v503
    %v505 = vrcp.pop %v488
    %v506 = vmul.f32 %v488, %v505
    %v507 = vsub.f32 1.0, %v506
    %v508 = vmul.f32 %v505, %v507
    %v509 = vadd.f32 %v505, %v508
    %vm510 = vweird.f32 %v488
    %vm511 = vweird.f32 %v505
    %vm512 = vmor %vm510, %vm511
    %v513 = vsel %vm512, %v505, %v509
    %v514 = vand.u32 2147483647, %v488
    %vm515 = vcmp.eq.f32.partialorder %v514, 8.507059e+37
    %v516 = vand.u32 %v488, 2147483648
    %v517 = vor.u32 1.1754944e-38, %v516
    %v518 = vsel %vm515, %v517, %v513
    %v519 = vmul.f32 1.0, %v518
    %v520 = vrcp.pop %v489
    %v521 = vmul.f32 %v489, %v520
    %v522 = vsub.f32 1.0, %v521
    %v523 = vmul.f32 %v520, %v522
    %v524 = vadd.f32 %v520, %v523
    %vm525 = vweird.f32 %v489
    %vm526 = vweird.f32 %v520
    %vm527 = vmor %vm525, %vm526
    %v528 = vsel %vm527, %v520, %v524
    %v529 = vand.u32 2147483647, %v489
    %vm530 = vcmp.eq.f32.partialorder %v529, 8.507059e+37
    %v531 = vand.u32 %v489, 2147483648
    %v532 = vor.u32 1.1754944e-38, %v531
    %v533 = vsel %vm530, %v532, %v528
    %v534 = vmul.f32 1.0, %v533
    %v535 = vtanh.pop %v477
    %v536 = vmul.f32 %v519, 0.0
    %v537 = vmul.f32 %v504, %v535
    %v538 = vadd.f32 %v536, %v537
    %v539 = vtanh.pop %v538
    %v540 = vmul.f32 %v534, %v539
    %v541 = vld [vmem:[#allocation2 + $0x20] sm:$0xff]
    %v542 = vld [vmem:[#allocation2 + $0x28] sm:$0xff]
    %v543 = vld [vmem:[#allocation2 + $0x30] sm:$0xff]
    %v544 = vld [vmem:[#allocation2 + $0x38] sm:$0xff]
    %545 = vmatpush.msra.mxu0 %v390
    %546 = vmatpush.msra.mxu0 %v386
    %547 = vmatpush.msra.mxu0 %v382
    %548 = vmatpush.msra.mxu0 %v378
    %549 = vmatpush.msra.mxu0 %v374
    %550 = vmatpush.msra.mxu0 %v370
    %551 = vmatpush.msra.mxu0 %v366
    %552 = vmatpush.msra.mxu0 %v362
    %553 = vmatpush.msra.mxu0 %v358
    %554 = vmatpush.msra.mxu0 %v354
    %555 = vmatpush.msra.mxu0 %v350
    %556 = vmatpush.msra.mxu0 %v346
    %557 = vmatpush.msra.mxu0 %v342
    %558 = vmatpush.msra.mxu0 %v338
    %559 = vmatpush.msra.mxu0 %v334
    %560 = vmatpush.msra.mxu0 %v330
    %561 = vmatmul.f32.gmra.mxu0 %v540
    %v562 = vpop.f32.mrf.mxu0
    %v563 = vadd.f32 0.0, %v562
    %564 = vdwg.mxu0
    %565 = vmatpush.msra.mxu0 %v391
    %566 = vmatpush.msra.mxu0 %v387
    %567 = vmatpush.msra.mxu0 %v383
    %568 = vmatpush.msra.mxu0 %v379
    %569 = vmatpush.msra.mxu0 %v375
    %570 = vmatpush.msra.mxu0 %v371
    %571 = vmatpush.msra.mxu0 %v367
    %572 = vmatpush.msra.mxu0 %v363
    %573 = vmatpush.msra.mxu0 %v359
    %574 = vmatpush.msra.mxu0 %v355
    %575 = vmatpush.msra.mxu0 %v351
    %576 = vmatpush.msra.mxu0 %v347
    %577 = vmatpush.msra.mxu0 %v343
    %578 = vmatpush.msra.mxu0 %v339
    %579 = vmatpush.msra.mxu0 %v335
    %580 = vmatpush.msra.mxu0 %v331
    %581 = vmatmul.f32.gmra.mxu0 %v540
    %v582 = vpop.f32.mrf.mxu0
    %v583 = vadd.f32 0.0, %v582
    %584 = vdwg.mxu0
    %585 = vmatpush.msra.mxu0 %v392
    %586 = vmatpush.msra.mxu0 %v388
    %587 = vmatpush.msra.mxu0 %v384
    %588 = vmatpush.msra.mxu0 %v380
    %589 = vmatpush.msra.mxu0 %v376
    %590 = vmatpush.msra.mxu0 %v372
    %591 = vmatpush.msra.mxu0 %v368
    %592 = vmatpush.msra.mxu0 %v364
    %593 = vmatpush.msra.mxu0 %v360
    %594 = vmatpush.msra.mxu0 %v356
    %595 = vmatpush.msra.mxu0 %v352
    %596 = vmatpush.msra.mxu0 %v348
    %597 = vmatpush.msra.mxu0 %v344
    %598 = vmatpush.msra.mxu0 %v340
    %599 = vmatpush.msra.mxu0 %v336
    %600 = vmatpush.msra.mxu0 %v332
    %601 = vmatmul.f32.gmra.mxu0 %v540
    %v602 = vpop.f32.mrf.mxu0
    %v603 = vadd.f32 0.0, %v602
    %604 = vdwg.mxu0
    %605 = vmatpush.msra.mxu0 %v393
    %606 = vmatpush.msra.mxu0 %v389
    %607 = vmatpush.msra.mxu0 %v385
    %608 = vmatpush.msra.mxu0 %v381
    %609 = vmatpush.msra.mxu0 %v377
    %610 = vmatpush.msra.mxu0 %v373
    %611 = vmatpush.msra.mxu0 %v369
    %612 = vmatpush.msra.mxu0 %v365
    %613 = vmatpush.msra.mxu0 %v361
    %614 = vmatpush.msra.mxu0 %v357
    %615 = vmatpush.msra.mxu0 %v353
    %616 = vmatpush.msra.mxu0 %v349
    %617 = vmatpush.msra.mxu0 %v345
    %618 = vmatpush.msra.mxu0 %v341
    %619 = vmatpush.msra.mxu0 %v337
    %620 = vmatpush.msra.mxu0 %v333
    %621 = vmatmul.f32.gmra.mxu0 %v540
    %v622 = vpop.f32.mrf.mxu0
    %v623 = vadd.f32 0.0, %v622
    %624 = vdwg.mxu0
    %v625 = vadd.f32 %v541, %v563
    %v626 = vadd.f32 %v542, %v583
    %v627 = vadd.f32 %v543, %v603
    %v628 = vadd.f32 %v544, %v623
    %v629 = vxor.u32 %v625, 2147483648
    %v630 = vxor.u32 %v626, 2147483648
    %v631 = vxor.u32 %v627, 2147483648
    %v632 = vmul.f32 %v629, 1.442695
    %v633 = vpow.pop %v632
    %v634 = vmul.f32 %v630, 1.442695
    %v635 = vpow.pop %v634
    %v636 = vmul.f32 %v631, 1.442695
    %v637 = vpow.pop %v636
    %v638 = vadd.f32 %v633, 1.0
    %v639 = vadd.f32 %v635, 1.0
    %v640 = vadd.f32 %v637, 1.0
    %v641 = vrcp.pop %v638
    %v642 = vmul.f32 %v638, %v641
    %v643 = vsub.f32 1.0, %v642
    %v644 = vmul.f32 %v641, %v643
    %v645 = vadd.f32 %v641, %v644
    %vm646 = vweird.f32 %v638
    %vm647 = vweird.f32 %v641
    %vm648 = vmor %vm646, %vm647
    %v649 = vsel %vm648, %v641, %v645
    %v650 = vand.u32 2147483647, %v638
    %vm651 = vcmp.eq.f32.partialorder %v650, 8.507059e+37
    %v652 = vand.u32 %v638, 2147483648
    %v653 = vor.u32 1.1754944e-38, %v652
    %v654 = vsel %vm651, %v653, %v649
    %v655 = vmul.f32 1.0, %v654
    %v656 = vrcp.pop %v639
    %v657 = vmul.f32 %v639, %v656
    %v658 = vsub.f32 1.0, %v657
    %v659 = vmul.f32 %v656, %v658
    %v660 = vadd.f32 %v656, %v659
    %vm661 = vweird.f32 %v639
    %vm662 = vweird.f32 %v656
    %vm663 = vmor %vm661, %vm662
    %v664 = vsel %vm663, %v656, %v660
    %v665 = vand.u32 2147483647, %v639
    %vm666 = vcmp.eq.f32.partialorder %v665, 8.507059e+37
    %v667 = vand.u32 %v639, 2147483648
    %v668 = vor.u32 1.1754944e-38, %v667
    %v669 = vsel %vm666, %v668, %v664
    %v670 = vmul.f32 1.0, %v669
    %v671 = vrcp.pop %v640
    %v672 = vmul.f32 %v640, %v671
    %v673 = vsub.f32 1.0, %v672
    %v674 = vmul.f32 %v671, %v673
    %v675 = vadd.f32 %v671, %v674
    %vm676 = vweird.f32 %v640
    %vm677 = vweird.f32 %v671
    %vm678 = vmor %vm676, %vm677
    %v679 = vsel %vm678, %v671, %v675
    %v680 = vand.u32 2147483647, %v640
    %vm681 = vcmp.eq.f32.partialorder %v680, 8.507059e+37
    %v682 = vand.u32 %v640, 2147483648
    %v683 = vor.u32 1.1754944e-38, %v682
    %v684 = vsel %vm681, %v683, %v679
    %v685 = vmul.f32 1.0, %v684
    %v686 = vtanh.pop %v628
    %v687 = vmul.f32 %v538, %v670
    %v688 = vmul.f32 %v655, %v686
    %v689 = vadd.f32 %v687, %v688
    %v690 = vtanh.pop %v689
    %v691 = vmul.f32 %v685, %v690
    %v692 = vld [vmem:[#allocation2 + $0x40] sm:$0xff]
    %v693 = vld [vmem:[#allocation2 + $0x48] sm:$0xff]
    %v694 = vld [vmem:[#allocation2 + $0x50] sm:$0xff]
    %v695 = vld [vmem:[#allocation2 + $0x58] sm:$0xff]
    %696 = vmatpush.msra.mxu0 %v390
    %697 = vmatpush.msra.mxu0 %v386
    %698 = vmatpush.msra.mxu0 %v382
    %699 = vmatpush.msra.mxu0 %v378
    %700 = vmatpush.msra.mxu0 %v374
    %701 = vmatpush.msra.mxu0 %v370
    %702 = vmatpush.msra.mxu0 %v366
    %703 = vmatpush.msra.mxu0 %v362
    %704 = vmatpush.msra.mxu0 %v358
    %705 = vmatpush.msra.mxu0 %v354
    %706 = vmatpush.msra.mxu0 %v350
    %707 = vmatpush.msra.mxu0 %v346
    %708 = vmatpush.msra.mxu0 %v342
    %709 = vmatpush.msra.mxu0 %v338
    %710 = vmatpush.msra.mxu0 %v334
    %711 = vmatpush.msra.mxu0 %v330
    %712 = vmatmul.f32.gmra.mxu0 %v691
    %v713 = vpop.f32.mrf.mxu0
    %v714 = vadd.f32 0.0, %v713
    %715 = vdwg.mxu0
    %716 = vmatpush.msra.mxu0 %v391
    %717 = vmatpush.msra.mxu0 %v387
    %718 = vmatpush.msra.mxu0 %v383
    %719 = vmatpush.msra.mxu0 %v379
    %720 = vmatpush.msra.mxu0 %v375
    %721 = vmatpush.msra.mxu0 %v371
    %722 = vmatpush.msra.mxu0 %v367
    %723 = vmatpush.msra.mxu0 %v363
    %724 = vmatpush.msra.mxu0 %v359
    %725 = vmatpush.msra.mxu0 %v355
    %726 = vmatpush.msra.mxu0 %v351
    %727 = vmatpush.msra.mxu0 %v347
    %728 = vmatpush.msra.mxu0 %v343
    %729 = vmatpush.msra.mxu0 %v339
    %730 = vmatpush.msra.mxu0 %v335
    %731 = vmatpush.msra.mxu0 %v331
    %732 = vmatmul.f32.gmra.mxu0 %v691
    %v733 = vpop.f32.mrf.mxu0
    %v734 = vadd.f32 0.0, %v733
    %735 = vdwg.mxu0
    %736 = vmatpush.msra.mxu0 %v392
    %737 = vmatpush.msra.mxu0 %v388
    %738 = vmatpush.msra.mxu0 %v384
    %739 = vmatpush.msra.mxu0 %v380
    %740 = vmatpush.msra.mxu0 %v376
    %741 = vmatpush.msra.mxu0 %v372
    %742 = vmatpush.msra.mxu0 %v368
    %743 = vmatpush.msra.mxu0 %v364
    %744 = vmatpush.msra.mxu0 %v360
    %745 = vmatpush.msra.mxu0 %v356
    %746 = vmatpush.msra.mxu0 %v352
    %747 = vmatpush.msra.mxu0 %v348
    %748 = vmatpush.msra.mxu0 %v344
    %749 = vmatpush.msra.mxu0 %v340
    %750 = vmatpush.msra.mxu0 %v336
    %751 = vmatpush.msra.mxu0 %v332
    %752 = vmatmul.f32.gmra.mxu0 %v691
    %v753 = vpop.f32.mrf.mxu0
    %v754 = vadd.f32 0.0, %v753
    %755 = vdwg.mxu0
    %756 = vmatpush.msra.mxu0 %v393
    %757 = vmatpush.msra.mxu0 %v389
    %758 = vmatpush.msra.mxu0 %v385
    %759 = vmatpush.msra.mxu0 %v381
    %760 = vmatpush.msra.mxu0 %v377
    %761 = vmatpush.msra.mxu0 %v373
    %762 = vmatpush.msra.mxu0 %v369
    %763 = vmatpush.msra.mxu0 %v365
    %764 = vmatpush.msra.mxu0 %v361
    %765 = vmatpush.msra.mxu0 %v357
    %766 = vmatpush.msra.mxu0 %v353
    %767 = vmatpush.msra.mxu0 %v349
    %768 = vmatpush.msra.mxu0 %v345
    %769 = vmatpush.msra.mxu0 %v341
    %770 = vmatpush.msra.mxu0 %v337
    %771 = vmatpush.msra.mxu0 %v333
    %772 = vmatmul.f32.gmra.mxu0 %v691
    %v773 = vpop.f32.mrf.mxu0
    %v774 = vadd.f32 0.0, %v773
    %775 = vdwg.mxu0
    %v776 = vadd.f32 %v692, %v714
    %v777 = vadd.f32 %v693, %v734
    %v778 = vadd.f32 %v694, %v754
    %v779 = vadd.f32 %v695, %v774
    %v780 = vxor.u32 %v776, 2147483648
    %v781 = vxor.u32 %v777, 2147483648
    %v782 = vxor.u32 %v778, 2147483648
    %v783 = vmul.f32 %v780, 1.442695
    %v784 = vpow.pop %v783
    %v785 = vmul.f32 %v781, 1.442695
    %v786 = vpow.pop %v785
    %v787 = vmul.f32 %v782, 1.442695
    %v788 = vpow.pop %v787
    %v789 = vadd.f32 %v784, 1.0
    %v790 = vadd.f32 %v786, 1.0
    %v791 = vadd.f32 %v788, 1.0
    %v792 = vrcp.pop %v789
    %v793 = vmul.f32 %v789, %v792
    %v794 = vsub.f32 1.0, %v793
    %v795 = vmul.f32 %v792, %v794
    %v796 = vadd.f32 %v792, %v795
    %vm797 = vweird.f32 %v789
    %vm798 = vweird.f32 %v792
    %vm799 = vmor %vm797, %vm798
    %v800 = vsel %vm799, %v792, %v796
    %v801 = vand.u32 2147483647, %v789
    %vm802 = vcmp.eq.f32.partialorder %v801, 8.507059e+37
    %v803 = vand.u32 %v789, 2147483648
    %v804 = vor.u32 1.1754944e-38, %v803
    %v805 = vsel %vm802, %v804, %v800
    %v806 = vmul.f32 1.0, %v805
    %v807 = vrcp.pop %v790
    %v808 = vmul.f32 %v790, %v807
    %v809 = vsub.f32 1.0, %v808
    %v810 = vmul.f32 %v807, %v809
    %v811 = vadd.f32 %v807, %v810
    %vm812 = vweird.f32 %v790
    %vm813 = vweird.f32 %v807
    %vm814 = vmor %vm812, %vm813
    %v815 = vsel %vm814, %v807, %v811
    %v816 = vand.u32 2147483647, %v790
    %vm817 = vcmp.eq.f32.partialorder %v816, 8.507059e+37
    %v818 = vand.u32 %v790, 2147483648
    %v819 = vor.u32 1.1754944e-38, %v818
    %v820 = vsel %vm817, %v819, %v815
    %v821 = vmul.f32 1.0, %v820
    %v822 = vrcp.pop %v791
    %v823 = vmul.f32 %v791, %v822
    %v824 = vsub.f32 1.0, %v823
    %v825 = vmul.f32 %v822, %v824
    %v826 = vadd.f32 %v822, %v825
    %vm827 = vweird.f32 %v791
    %vm828 = vweird.f32 %v822
    %vm829 = vmor %vm827, %vm828
    %v830 = vsel %vm829, %v822, %v826
    %v831 = vand.u32 2147483647, %v791
    %vm832 = vcmp.eq.f32.partialorder %v831, 8.507059e+37
    %v833 = vand.u32 %v791, 2147483648
    %v834 = vor.u32 1.1754944e-38, %v833
    %v835 = vsel %vm832, %v834, %v830
    %v836 = vmul.f32 1.0, %v835
    %v837 = vtanh.pop %v779
    %v838 = vmul.f32 %v689, %v821
    %v839 = vmul.f32 %v806, %v837
    %v840 = vadd.f32 %v838, %v839
    %v841 = vtanh.pop %v840
    %v842 = vmul.f32 %v836, %v841
    %v843 = vld [vmem:[#allocation2 + $0x60] sm:$0xff]
    %v844 = vld [vmem:[#allocation2 + $0x68] sm:$0xff]
    %v845 = vld [vmem:[#allocation2 + $0x70] sm:$0xff]
    %v846 = vld [vmem:[#allocation2 + $0x78] sm:$0xff]
    %847 = vmatpush.msra.mxu0 %v390
    %848 = vmatpush.msra.mxu0 %v386
    %849 = vmatpush.msra.mxu0 %v382
    %850 = vmatpush.msra.mxu0 %v378
    %851 = vmatpush.msra.mxu0 %v374
    %852 = vmatpush.msra.mxu0 %v370
    %853 = vmatpush.msra.mxu0 %v366
    %854 = vmatpush.msra.mxu0 %v362
    %855 = vmatpush.msra.mxu0 %v358
    %856 = vmatpush.msra.mxu0 %v354
    %857 = vmatpush.msra.mxu0 %v350
    %858 = vmatpush.msra.mxu0 %v346
    %859 = vmatpush.msra.mxu0 %v342
    %860 = vmatpush.msra.mxu0 %v338
    %861 = vmatpush.msra.mxu0 %v334
    %862 = vmatpush.msra.mxu0 %v330
    %863 = vmatmul.f32.gmra.mxu0 %v842
    %v864 = vpop.f32.mrf.mxu0
    %v865 = vadd.f32 0.0, %v864
    %866 = vdwg.mxu0
    %867 = vmatpush.msra.mxu0 %v391
    %868 = vmatpush.msra.mxu0 %v387
    %869 = vmatpush.msra.mxu0 %v383
    %870 = vmatpush.msra.mxu0 %v379
    %871 = vmatpush.msra.mxu0 %v375
    %872 = vmatpush.msra.mxu0 %v371
    %873 = vmatpush.msra.mxu0 %v367
    %874 = vmatpush.msra.mxu0 %v363
    %875 = vmatpush.msra.mxu0 %v359
    %876 = vmatpush.msra.mxu0 %v355
    %877 = vmatpush.msra.mxu0 %v351
    %878 = vmatpush.msra.mxu0 %v347
    %879 = vmatpush.msra.mxu0 %v343
    %880 = vmatpush.msra.mxu0 %v339
    %881 = vmatpush.msra.mxu0 %v335
    %882 = vmatpush.msra.mxu0 %v331
    %883 = vmatmul.f32.gmra.mxu0 %v842
    %v884 = vpop.f32.mrf.mxu0
    %v885 = vadd.f32 0.0, %v884
    %886 = vdwg.mxu0
    %887 = vmatpush.msra.mxu0 %v392
    %888 = vmatpush.msra.mxu0 %v388
    %889 = vmatpush.msra.mxu0 %v384
    %890 = vmatpush.msra.mxu0 %v380
    %891 = vmatpush.msra.mxu0 %v376
    %892 = vmatpush.msra.mxu0 %v372
    %893 = vmatpush.msra.mxu0 %v368
    %894 = vmatpush.msra.mxu0 %v364
    %895 = vmatpush.msra.mxu0 %v360
    %896 = vmatpush.msra.mxu0 %v356
    %897 = vmatpush.msra.mxu0 %v352
    %898 = vmatpush.msra.mxu0 %v348
    %899 = vmatpush.msra.mxu0 %v344
    %900 = vmatpush.msra.mxu0 %v340
    %901 = vmatpush.msra.mxu0 %v336
    %902 = vmatpush.msra.mxu0 %v332
    %903 = vmatmul.f32.gmra.mxu0 %v842
    %v904 = vpop.f32.mrf.mxu0
    %v905 = vadd.f32 0.0, %v904
    %906 = vdwg.mxu0
    %907 = vmatpush.msra.mxu0 %v393
    %908 = vmatpush.msra.mxu0 %v389
    %909 = vmatpush.msra.mxu0 %v385
    %910 = vmatpush.msra.mxu0 %v381
    %911 = vmatpush.msra.mxu0 %v377
    %912 = vmatpush.msra.mxu0 %v373
    %913 = vmatpush.msra.mxu0 %v369
    %914 = vmatpush.msra.mxu0 %v365
    %915 = vmatpush.msra.mxu0 %v361
    %916 = vmatpush.msra.mxu0 %v357
    %917 = vmatpush.msra.mxu0 %v353
    %918 = vmatpush.msra.mxu0 %v349
    %919 = vmatpush.msra.mxu0 %v345
    %920 = vmatpush.msra.mxu0 %v341
    %921 = vmatpush.msra.mxu0 %v337
    %922 = vmatpush.msra.mxu0 %v333
    %923 = vmatmul.f32.gmra.mxu0 %v842
    %v924 = vpop.f32.mrf.mxu0
    %v925 = vadd.f32 0.0, %v924
    %926 = vdwg.mxu0
    %v927 = vadd.f32 %v843, %v865
    %v928 = vadd.f32 %v844, %v885
    %v929 = vadd.f32 %v845, %v905
    %v930 = vadd.f32 %v846, %v925
    %v931 = vxor.u32 %v927, 2147483648
    %v932 = vxor.u32 %v928, 2147483648
    %v933 = vxor.u32 %v929, 2147483648
    %v934 = vmul.f32 %v931, 1.442695
    %v935 = vpow.pop %v934
    %v936 = vmul.f32 %v932, 1.442695
    %v937 = vpow.pop %v936
    %v938 = vmul.f32 %v933, 1.442695
    %v939 = vpow.pop %v938
    %v940 = vadd.f32 %v935, 1.0
    %v941 = vadd.f32 %v937, 1.0
    %v942 = vadd.f32 %v939, 1.0
    %v943 = vrcp.pop %v940
    %v944 = vmul.f32 %v940, %v943
    %v945 = vsub.f32 1.0, %v944
    %v946 = vmul.f32 %v943, %v945
    %v947 = vadd.f32 %v943, %v946
    %vm948 = vweird.f32 %v940
    %vm949 = vweird.f32 %v943
    %vm950 = vmor %vm948, %vm949
    %v951 = vsel %vm950, %v943, %v947
    %v952 = vand.u32 2147483647, %v940
    %vm953 = vcmp.eq.f32.partialorder %v952, 8.507059e+37
    %v954 = vand.u32 %v940, 2147483648
    %v955 = vor.u32 1.1754944e-38, %v954
    %v956 = vsel %vm953, %v955, %v951
    %v957 = vmul.f32 1.0, %v956
    %v958 = vrcp.pop %v941
    %v959 = vmul.f32 %v941, %v958
    %v960 = vsub.f32 1.0, %v959
    %v961 = vmul.f32 %v958, %v960
    %v962 = vadd.f32 %v958, %v961
    %vm963 = vweird.f32 %v941
    %vm964 = vweird.f32 %v958
    %vm965 = vmor %vm963, %vm964
    %v966 = vsel %vm965, %v958, %v962
    %v967 = vand.u32 2147483647, %v941
    %vm968 = vcmp.eq.f32.partialorder %v967, 8.507059e+37
    %v969 = vand.u32 %v941, 2147483648
    %v970 = vor.u32 1.1754944e-38, %v969
    %v971 = vsel %vm968, %v970, %v966
    %v972 = vmul.f32 1.0, %v971
    %v973 = vrcp.pop %v942
    %v974 = vmul.f32 %v942, %v973
    %v975 = vsub.f32 1.0, %v974
    %v976 = vmul.f32 %v973, %v975
    %v977 = vadd.f32 %v973, %v976
    %vm978 = vweird.f32 %v942
    %vm979 = vweird.f32 %v973
    %vm980 = vmor %vm978, %vm979
    %v981 = vsel %vm980, %v973, %v977
    %v982 = vand.u32 2147483647, %v942
    %vm983 = vcmp.eq.f32.partialorder %v982, 8.507059e+37
    %v984 = vand.u32 %v942, 2147483648
    %v985 = vor.u32 1.1754944e-38, %v984
    %v986 = vsel %vm983, %v985, %v981
    %v987 = vmul.f32 1.0, %v986
    %v988 = vtanh.pop %v930
    %v989 = vmul.f32 %v840, %v972
    %v990 = vmul.f32 %v957, %v988
    %v991 = vadd.f32 %v989, %v990
    %v992 = vtanh.pop %v991
    %v993 = vmul.f32 %v987, %v992
    %v994 = vld [vmem:[#allocation2 + $0x80] sm:$0xff]
    %v995 = vld [vmem:[#allocation2 + $0x88] sm:$0xff]
    %v996 = vld [vmem:[#allocation2 + $0x90] sm:$0xff]
    %v997 = vld [vmem:[#allocation2 + $0x98] sm:$0xff]
    %998 = vmatpush.msra.mxu0 %v390
    %999 = vmatpush.msra.mxu0 %v386
    %1000 = vmatpush.msra.mxu0 %v382
    %1001 = vmatpush.msra.mxu0 %v378
    %1002 = vmatpush.msra.mxu0 %v374
    %1003 = vmatpush.msra.mxu0 %v370
    %1004 = vmatpush.msra.mxu0 %v366
    %1005 = vmatpush.msra.mxu0 %v362
    %1006 = vmatpush.msra.mxu0 %v358
    %1007 = vmatpush.msra.mxu0 %v354
    %1008 = vmatpush.msra.mxu0 %v350
    %1009 = vmatpush.msra.mxu0 %v346
    %1010 = vmatpush.msra.mxu0 %v342
    %1011 = vmatpush.msra.mxu0 %v338
    %1012 = vmatpush.msra.mxu0 %v334
    %1013 = vmatpush.msra.mxu0 %v330
    %1014 = vmatmul.f32.gmra.mxu0 %v993
    %v1015 = vpop.f32.mrf.mxu0
    %v1016 = vadd.f32 0.0, %v1015
    %1017 = vdwg.mxu0
    %1018 = vmatpush.msra.mxu0 %v391
    %1019 = vmatpush.msra.mxu0 %v387
    %1020 = vmatpush.msra.mxu0 %v383
    %1021 = vmatpush.msra.mxu0 %v379
    %1022 = vmatpush.msra.mxu0 %v375
    %1023 = vmatpush.msra.mxu0 %v371
    %1024 = vmatpush.msra.mxu0 %v367
    %1025 = vmatpush.msra.mxu0 %v363
    %1026 = vmatpush.msra.mxu0 %v359
    %1027 = vmatpush.msra.mxu0 %v355
    %1028 = vmatpush.msra.mxu0 %v351
    %1029 = vmatpush.msra.mxu0 %v347
    %1030 = vmatpush.msra.mxu0 %v343
    %1031 = vmatpush.msra.mxu0 %v339
    %1032 = vmatpush.msra.mxu0 %v335
    %1033 = vmatpush.msra.mxu0 %v331
    %1034 = vmatmul.f32.gmra.mxu0 %v993
    %v1035 = vpop.f32.mrf.mxu0
    %v1036 = vadd.f32 0.0, %v1035
    %1037 = vdwg.mxu0
    %1038 = vmatpush.msra.mxu0 %v392
    %1039 = vmatpush.msra.mxu0 %v388
    %1040 = vmatpush.msra.mxu0 %v384
    %1041 = vmatpush.msra.mxu0 %v380
    %1042 = vmatpush.msra.mxu0 %v376
    %1043 = vmatpush.msra.mxu0 %v372
    %1044 = vmatpush.msra.mxu0 %v368
    %1045 = vmatpush.msra.mxu0 %v364
    %1046 = vmatpush.msra.mxu0 %v360
    %1047 = vmatpush.msra.mxu0 %v356
    %1048 = vmatpush.msra.mxu0 %v352
    %1049 = vmatpush.msra.mxu0 %v348
    %1050 = vmatpush.msra.mxu0 %v344
    %1051 = vmatpush.msra.mxu0 %v340
    %1052 = vmatpush.msra.mxu0 %v336
    %1053 = vmatpush.msra.mxu0 %v332
    %1054 = vmatmul.f32.gmra.mxu0 %v993
    %v1055 = vpop.f32.mrf.mxu0
    %v1056 = vadd.f32 0.0, %v1055
    %1057 = vdwg.mxu0
    %1058 = vmatpush.msra.mxu0 %v393
    %1059 = vmatpush.msra.mxu0 %v389
    %1060 = vmatpush.msra.mxu0 %v385
    %1061 = vmatpush.msra.mxu0 %v381
    %1062 = vmatpush.msra.mxu0 %v377
    %1063 = vmatpush.msra.mxu0 %v373
    %1064 = vmatpush.msra.mxu0 %v369
    %1065 = vmatpush.msra.mxu0 %v365
    %1066 = vmatpush.msra.mxu0 %v361
    %1067 = vmatpush.msra.mxu0 %v357
    %1068 = vmatpush.msra.mxu0 %v353
    %1069 = vmatpush.msra.mxu0 %v349
    %1070 = vmatpush.msra.mxu0 %v345
    %1071 = vmatpush.msra.mxu0 %v341
    %1072 = vmatpush.msra.mxu0 %v337
    %1073 = vmatpush.msra.mxu0 %v333
    %1074 = vmatmul.f32.gmra.mxu0 %v993
    %v1075 = vpop.f32.mrf.mxu0
    %v1076 = vadd.f32 0.0, %v1075
    %1077 = vdwg.mxu0
    %v1078 = vadd.f32 %v994, %v1016
    %v1079 = vadd.f32 %v995, %v1036
    %v1080 = vadd.f32 %v996, %v1056
    %v1081 = vadd.f32 %v997, %v1076
    %v1082 = vxor.u32 %v1078, 2147483648
    %v1083 = vxor.u32 %v1079, 2147483648
    %v1084 = vxor.u32 %v1080, 2147483648
    %v1085 = vmul.f32 %v1082, 1.442695
    %v1086 = vpow.pop %v1085
    %v1087 = vmul.f32 %v1083, 1.442695
    %v1088 = vpow.pop %v1087
    %v1089 = vmul.f32 %v1084, 1.442695
    %v1090 = vpow.pop %v1089
    %v1091 = vadd.f32 %v1086, 1.0
    %v1092 = vadd.f32 %v1088, 1.0
    %v1093 = vadd.f32 %v1090, 1.0
    %v1094 = vrcp.pop %v1091
    %v1095 = vmul.f32 %v1091, %v1094
    %v1096 = vsub.f32 1.0, %v1095
    %v1097 = vmul.f32 %v1094, %v1096
    %v1098 = vadd.f32 %v1094, %v1097
    %vm1099 = vweird.f32 %v1091
    %vm1100 = vweird.f32 %v1094
    %vm1101 = vmor %vm1099, %vm1100
    %v1102 = vsel %vm1101, %v1094, %v1098
    %v1103 = vand.u32 2147483647, %v1091
    %vm1104 = vcmp.eq.f32.partialorder %v1103, 8.507059e+37
    %v1105 = vand.u32 %v1091, 2147483648
    %v1106 = vor.u32 1.1754944e-38, %v1105
    %v1107 = vsel %vm1104, %v1106, %v1102
    %v1108 = vmul.f32 1.0, %v1107
    %v1109 = vrcp.pop %v1092
    %v1110 = vmul.f32 %v1092, %v1109
    %v1111 = vsub.f32 1.0, %v1110
    %v1112 = vmul.f32 %v1109, %v1111
    %v1113 = vadd.f32 %v1109, %v1112
    %vm1114 = vweird.f32 %v1092
    %vm1115 = vweird.f32 %v1109
    %vm1116 = vmor %vm1114, %vm1115
    %v1117 = vsel %vm1116, %v1109, %v1113
    %v1118 = vand.u32 2147483647, %v1092
    %vm1119 = vcmp.eq.f32.partialorder %v1118, 8.507059e+37
    %v1120 = vand.u32 %v1092, 2147483648
    %v1121 = vor.u32 1.1754944e-38, %v1120
    %v1122 = vsel %vm1119, %v1121, %v1117
    %v1123 = vmul.f32 1.0, %v1122
    %v1124 = vrcp.pop %v1093
    %v1125 = vmul.f32 %v1093, %v1124
    %v1126 = vsub.f32 1.0, %v1125
    %v1127 = vmul.f32 %v1124, %v1126
    %v1128 = vadd.f32 %v1124, %v1127
    %vm1129 = vweird.f32 %v1093
    %vm1130 = vweird.f32 %v1124
    %vm1131 = vmor %vm1129, %vm1130
    %v1132 = vsel %vm1131, %v1124, %v1128
    %v1133 = vand.u32 2147483647, %v1093
    %vm1134 = vcmp.eq.f32.partialorder %v1133, 8.507059e+37
    %v1135 = vand.u32 %v1093, 2147483648
    %v1136 = vor.u32 1.1754944e-38, %v1135
    %v1137 = vsel %vm1134, %v1136, %v1132
    %v1138 = vmul.f32 1.0, %v1137
    %v1139 = vtanh.pop %v1081
    %v1140 = vmul.f32 %v991, %v1123
    %v1141 = vmul.f32 %v1108, %v1139
    %v1142 = vadd.f32 %v1140, %v1141
    %v1143 = vtanh.pop %v1142
    %v1144 = vmul.f32 %v1138, %v1143
    %v1145 = vld [vmem:[#allocation2 + $0xa0] sm:$0xff]
    %v1146 = vld [vmem:[#allocation2 + $0xa8] sm:$0xff]
    %v1147 = vld [vmem:[#allocation2 + $0xb0] sm:$0xff]
    %v1148 = vld [vmem:[#allocation2 + $0xb8] sm:$0xff]
    %1149 = vmatpush.msra.mxu0 %v390
    %1150 = vmatpush.msra.mxu0 %v386
    %1151 = vmatpush.msra.mxu0 %v382
    %1152 = vmatpush.msra.mxu0 %v378
    %1153 = vmatpush.msra.mxu0 %v374
    %1154 = vmatpush.msra.mxu0 %v370
    %1155 = vmatpush.msra.mxu0 %v366
    %1156 = vmatpush.msra.mxu0 %v362
    %1157 = vmatpush.msra.mxu0 %v358
    %1158 = vmatpush.msra.mxu0 %v354
    %1159 = vmatpush.msra.mxu0 %v350
    %1160 = vmatpush.msra.mxu0 %v346
    %1161 = vmatpush.msra.mxu0 %v342
    %1162 = vmatpush.msra.mxu0 %v338
    %1163 = vmatpush.msra.mxu0 %v334
    %1164 = vmatpush.msra.mxu0 %v330
    %1165 = vmatmul.f32.gmra.mxu0 %v1144
    %v1166 = vpop.f32.mrf.mxu0
    %v1167 = vadd.f32 0.0, %v1166
    %1168 = vdwg.mxu0
    %1169 = vmatpush.msra.mxu0 %v391
    %1170 = vmatpush.msra.mxu0 %v387
    %1171 = vmatpush.msra.mxu0 %v383
    %1172 = vmatpush.msra.mxu0 %v379
    %1173 = vmatpush.msra.mxu0 %v375
    %1174 = vmatpush.msra.mxu0 %v371
    %1175 = vmatpush.msra.mxu0 %v367
    %1176 = vmatpush.msra.mxu0 %v363
    %1177 = vmatpush.msra.mxu0 %v359
    %1178 = vmatpush.msra.mxu0 %v355
    %1179 = vmatpush.msra.mxu0 %v351
    %1180 = vmatpush.msra.mxu0 %v347
    %1181 = vmatpush.msra.mxu0 %v343
    %1182 = vmatpush.msra.mxu0 %v339
    %1183 = vmatpush.msra.mxu0 %v335
    %1184 = vmatpush.msra.mxu0 %v331
    %1185 = vmatmul.f32.gmra.mxu0 %v1144
    %v1186 = vpop.f32.mrf.mxu0
    %v1187 = vadd.f32 0.0, %v1186
    %1188 = vdwg.mxu0
    %1189 = vmatpush.msra.mxu0 %v392
    %1190 = vmatpush.msra.mxu0 %v388
    %1191 = vmatpush.msra.mxu0 %v384
    %1192 = vmatpush.msra.mxu0 %v380
    %1193 = vmatpush.msra.mxu0 %v376
    %1194 = vmatpush.msra.mxu0 %v372
    %1195 = vmatpush.msra.mxu0 %v368
    %1196 = vmatpush.msra.mxu0 %v364
    %1197 = vmatpush.msra.mxu0 %v360
    %1198 = vmatpush.msra.mxu0 %v356
    %1199 = vmatpush.msra.mxu0 %v352
    %1200 = vmatpush.msra.mxu0 %v348
    %1201 = vmatpush.msra.mxu0 %v344
    %1202 = vmatpush.msra.mxu0 %v340
    %1203 = vmatpush.msra.mxu0 %v336
    %1204 = vmatpush.msra.mxu0 %v332
    %1205 = vmatmul.f32.gmra.mxu0 %v1144
    %v1206 = vpop.f32.mrf.mxu0
    %v1207 = vadd.f32 0.0, %v1206
    %1208 = vdwg.mxu0
    %1209 = vmatpush.msra.mxu0 %v393
    %1210 = vmatpush.msra.mxu0 %v389
    %1211 = vmatpush.msra.mxu0 %v385
    %1212 = vmatpush.msra.mxu0 %v381
    %1213 = vmatpush.msra.mxu0 %v377
    %1214 = vmatpush.msra.mxu0 %v373
    %1215 = vmatpush.msra.mxu0 %v369
    %1216 = vmatpush.msra.mxu0 %v365
    %1217 = vmatpush.msra.mxu0 %v361
    %1218 = vmatpush.msra.mxu0 %v357
    %1219 = vmatpush.msra.mxu0 %v353
    %1220 = vmatpush.msra.mxu0 %v349
    %1221 = vmatpush.msra.mxu0 %v345
    %1222 = vmatpush.msra.mxu0 %v341
    %1223 = vmatpush.msra.mxu0 %v337
    %1224 = vmatpush.msra.mxu0 %v333
    %1225 = vmatmul.f32.gmra.mxu0 %v1144
    %v1226 = vpop.f32.mrf.mxu0
    %v1227 = vadd.f32 0.0, %v1226
    %1228 = vdwg.mxu0
    %v1229 = vadd.f32 %v1145, %v1167
    %v1230 = vadd.f32 %v1146, %v1187
    %v1231 = vadd.f32 %v1147, %v1207
    %v1232 = vadd.f32 %v1148, %v1227
    %v1233 = vxor.u32 %v1229, 2147483648
    %v1234 = vxor.u32 %v1230, 2147483648
    %v1235 = vxor.u32 %v1231, 2147483648
    %v1236 = vmul.f32 %v1233, 1.442695
    %v1237 = vpow.pop %v1236
    %v1238 = vmul.f32 %v1234, 1.442695
    %v1239 = vpow.pop %v1238
    %v1240 = vmul.f32 %v1235, 1.442695
    %v1241 = vpow.pop %v1240
    %v1242 = vadd.f32 %v1237, 1.0
    %v1243 = vadd.f32 %v1239, 1.0
    %v1244 = vadd.f32 %v1241, 1.0
    %v1245 = vrcp.pop %v1242
    %v1246 = vmul.f32 %v1242, %v1245
    %v1247 = vsub.f32 1.0, %v1246
    %v1248 = vmul.f32 %v1245, %v1247
    %v1249 = vadd.f32 %v1245, %v1248
    %vm1250 = vweird.f32 %v1242
    %vm1251 = vweird.f32 %v1245
    %vm1252 = vmor %vm1250, %vm1251
    %v1253 = vsel %vm1252, %v1245, %v1249
    %v1254 = vand.u32 2147483647, %v1242
    %vm1255 = vcmp.eq.f32.partialorder %v1254, 8.507059e+37
    %v1256 = vand.u32 %v1242, 2147483648
    %v1257 = vor.u32 1.1754944e-38, %v1256
    %v1258 = vsel %vm1255, %v1257, %v1253
    %v1259 = vmul.f32 1.0, %v1258
    %v1260 = vrcp.pop %v1243
    %v1261 = vmul.f32 %v1243, %v1260
    %v1262 = vsub.f32 1.0, %v1261
    %v1263 = vmul.f32 %v1260, %v1262
    %v1264 = vadd.f32 %v1260, %v1263
    %vm1265 = vweird.f32 %v1243
    %vm1266 = vweird.f32 %v1260
    %vm1267 = vmor %vm1265, %vm1266
    %v1268 = vsel %vm1267, %v1260, %v1264
    %v1269 = vand.u32 2147483647, %v1243
    %vm1270 = vcmp.eq.f32.partialorder %v1269, 8.507059e+37
    %v1271 = vand.u32 %v1243, 2147483648
    %v1272 = vor.u32 1.1754944e-38, %v1271
    %v1273 = vsel %vm1270, %v1272, %v1268
    %v1274 = vmul.f32 1.0, %v1273
    %v1275 = vrcp.pop %v1244
    %v1276 = vmul.f32 %v1244, %v1275
    %v1277 = vsub.f32 1.0, %v1276
    %v1278 = vmul.f32 %v1275, %v1277
    %v1279 = vadd.f32 %v1275, %v1278
    %vm1280 = vweird.f32 %v1244
    %vm1281 = vweird.f32 %v1275
    %vm1282 = vmor %vm1280, %vm1281
    %v1283 = vsel %vm1282, %v1275, %v1279
    %v1284 = vand.u32 2147483647, %v1244
    %vm1285 = vcmp.eq.f32.partialorder %v1284, 8.507059e+37
    %v1286 = vand.u32 %v1244, 2147483648
    %v1287 = vor.u32 1.1754944e-38, %v1286
    %v1288 = vsel %vm1285, %v1287, %v1283
    %v1289 = vmul.f32 1.0, %v1288
    %v1290 = vtanh.pop %v1232
    %v1291 = vmul.f32 %v1142, %v1274
    %v1292 = vmul.f32 %v1259, %v1290
    %v1293 = vadd.f32 %v1291, %v1292
    %v1294 = vtanh.pop %v1293
    %v1295 = vmul.f32 %v1289, %v1294
    %v1296 = vld [vmem:[#allocation2 + $0xc0] sm:$0xff]
    %v1297 = vld [vmem:[#allocation2 + $0xc8] sm:$0xff]
    %v1298 = vld [vmem:[#allocation2 + $0xd0] sm:$0xff]
    %v1299 = vld [vmem:[#allocation2 + $0xd8] sm:$0xff]
    %1300 = vmatpush.msra.mxu0 %v390
    %1301 = vmatpush.msra.mxu0 %v386
    %1302 = vmatpush.msra.mxu0 %v382
    %1303 = vmatpush.msra.mxu0 %v378
    %1304 = vmatpush.msra.mxu0 %v374
    %1305 = vmatpush.msra.mxu0 %v370
    %1306 = vmatpush.msra.mxu0 %v366
    %1307 = vmatpush.msra.mxu0 %v362
    %1308 = vmatpush.msra.mxu0 %v358
    %1309 = vmatpush.msra.mxu0 %v354
    %1310 = vmatpush.msra.mxu0 %v350
    %1311 = vmatpush.msra.mxu0 %v346
    %1312 = vmatpush.msra.mxu0 %v342
    %1313 = vmatpush.msra.mxu0 %v338
    %1314 = vmatpush.msra.mxu0 %v334
    %1315 = vmatpush.msra.mxu0 %v330
    %1316 = vmatmul.f32.gmra.mxu0 %v1295
    %v1317 = vpop.f32.mrf.mxu0
    %v1318 = vadd.f32 0.0, %v1317
    %1319 = vdwg.mxu0
    %1320 = vmatpush.msra.mxu0 %v391
    %1321 = vmatpush.msra.mxu0 %v387
    %1322 = vmatpush.msra.mxu0 %v383
    %1323 = vmatpush.msra.mxu0 %v379
    %1324 = vmatpush.msra.mxu0 %v375
    %1325 = vmatpush.msra.mxu0 %v371
    %1326 = vmatpush.msra.mxu0 %v367
    %1327 = vmatpush.msra.mxu0 %v363
    %1328 = vmatpush.msra.mxu0 %v359
    %1329 = vmatpush.msra.mxu0 %v355
    %1330 = vmatpush.msra.mxu0 %v351
    %1331 = vmatpush.msra.mxu0 %v347
    %1332 = vmatpush.msra.mxu0 %v343
    %1333 = vmatpush.msra.mxu0 %v339
    %1334 = vmatpush.msra.mxu0 %v335
    %1335 = vmatpush.msra.mxu0 %v331
    %1336 = vmatmul.f32.gmra.mxu0 %v1295
    %v1337 = vpop.f32.mrf.mxu0
    %v1338 = vadd.f32 0.0, %v1337
    %1339 = vdwg.mxu0
    %1340 = vmatpush.msra.mxu0 %v392
    %1341 = vmatpush.msra.mxu0 %v388
    %1342 = vmatpush.msra.mxu0 %v384
    %1343 = vmatpush.msra.mxu0 %v380
    %1344 = vmatpush.msra.mxu0 %v376
    %1345 = vmatpush.msra.mxu0 %v372
    %1346 = vmatpush.msra.mxu0 %v368
    %1347 = vmatpush.msra.mxu0 %v364
    %1348 = vmatpush.msra.mxu0 %v360
    %1349 = vmatpush.msra.mxu0 %v356
    %1350 = vmatpush.msra.mxu0 %v352
    %1351 = vmatpush.msra.mxu0 %v348
    %1352 = vmatpush.msra.mxu0 %v344
    %1353 = vmatpush.msra.mxu0 %v340
    %1354 = vmatpush.msra.mxu0 %v336
    %1355 = vmatpush.msra.mxu0 %v332
    %1356 = vmatmul.f32.gmra.mxu0 %v1295
    %v1357 = vpop.f32.mrf.mxu0
    %v1358 = vadd.f32 0.0, %v1357
    %1359 = vdwg.mxu0
    %1360 = vmatpush.msra.mxu0 %v393
    %1361 = vmatpush.msra.mxu0 %v389
    %1362 = vmatpush.msra.mxu0 %v385
    %1363 = vmatpush.msra.mxu0 %v381
    %1364 = vmatpush.msra.mxu0 %v377
    %1365 = vmatpush.msra.mxu0 %v373
    %1366 = vmatpush.msra.mxu0 %v369
    %1367 = vmatpush.msra.mxu0 %v365
    %1368 = vmatpush.msra.mxu0 %v361
    %1369 = vmatpush.msra.mxu0 %v357
    %1370 = vmatpush.msra.mxu0 %v353
    %1371 = vmatpush.msra.mxu0 %v349
    %1372 = vmatpush.msra.mxu0 %v345
    %1373 = vmatpush.msra.mxu0 %v341
    %1374 = vmatpush.msra.mxu0 %v337
    %1375 = vmatpush.msra.mxu0 %v333
    %1376 = vmatmul.f32.gmra.mxu0 %v1295
    %v1377 = vpop.f32.mrf.mxu0
    %v1378 = vadd.f32 0.0, %v1377
    %1379 = vdwg.mxu0
    %v1380 = vadd.f32 %v1296, %v1318
    %v1381 = vadd.f32 %v1297, %v1338
    %v1382 = vadd.f32 %v1298, %v1358
    %v1383 = vadd.f32 %v1299, %v1378
    %v1384 = vxor.u32 %v1380, 2147483648
    %v1385 = vxor.u32 %v1381, 2147483648
    %v1386 = vxor.u32 %v1382, 2147483648
    %v1387 = vmul.f32 %v1384, 1.442695
    %v1388 = vpow.pop %v1387
    %v1389 = vmul.f32 %v1385, 1.442695
    %v1390 = vpow.pop %v1389
    %v1391 = vmul.f32 %v1386, 1.442695
    %v1392 = vpow.pop %v1391
    %v1393 = vadd.f32 %v1388, 1.0
    %v1394 = vadd.f32 %v1390, 1.0
    %v1395 = vadd.f32 %v1392, 1.0
    %v1396 = vrcp.pop %v1393
    %v1397 = vmul.f32 %v1393, %v1396
    %v1398 = vsub.f32 1.0, %v1397
    %v1399 = vmul.f32 %v1396, %v1398
    %v1400 = vadd.f32 %v1396, %v1399
    %vm1401 = vweird.f32 %v1393
    %vm1402 = vweird.f32 %v1396
    %vm1403 = vmor %vm1401, %vm1402
    %v1404 = vsel %vm1403, %v1396, %v1400
    %v1405 = vand.u32 2147483647, %v1393
    %vm1406 = vcmp.eq.f32.partialorder %v1405, 8.507059e+37
    %v1407 = vand.u32 %v1393, 2147483648
    %v1408 = vor.u32 1.1754944e-38, %v1407
    %v1409 = vsel %vm1406, %v1408, %v1404
    %v1410 = vmul.f32 1.0, %v1409
    %v1411 = vrcp.pop %v1394
    %v1412 = vmul.f32 %v1394, %v1411
    %v1413 = vsub.f32 1.0, %v1412
    %v1414 = vmul.f32 %v1411, %v1413
    %v1415 = vadd.f32 %v1411, %v1414
    %vm1416 = vweird.f32 %v1394
    %vm1417 = vweird.f32 %v1411
    %vm1418 = vmor %vm1416, %vm1417
    %v1419 = vsel %vm1418, %v1411, %v1415
    %v1420 = vand.u32 2147483647, %v1394
    %vm1421 = vcmp.eq.f32.partialorder %v1420, 8.507059e+37
    %v1422 = vand.u32 %v1394, 2147483648
    %v1423 = vor.u32 1.1754944e-38, %v1422
    %v1424 = vsel %vm1421, %v1423, %v1419
    %v1425 = vmul.f32 1.0, %v1424
    %v1426 = vrcp.pop %v1395
    %v1427 = vmul.f32 %v1395, %v1426
    %v1428 = vsub.f32 1.0, %v1427
    %v1429 = vmul.f32 %v1426, %v1428
    %v1430 = vadd.f32 %v1426, %v1429
    %vm1431 = vweird.f32 %v1395
    %vm1432 = vweird.f32 %v1426
    %vm1433 = vmor %vm1431, %vm1432
    %v1434 = vsel %vm1433, %v1426, %v1430
    %v1435 = vand.u32 2147483647, %v1395
    %vm1436 = vcmp.eq.f32.partialorder %v1435, 8.507059e+37
    %v1437 = vand.u32 %v1395, 2147483648
    %v1438 = vor.u32 1.1754944e-38, %v1437
    %v1439 = vsel %vm1436, %v1438, %v1434
    %v1440 = vmul.f32 1.0, %v1439
    %v1441 = vtanh.pop %v1383
    %v1442 = vmul.f32 %v1293, %v1425
    %v1443 = vmul.f32 %v1410, %v1441
    %v1444 = vadd.f32 %v1442, %v1443
    %v1445 = vtanh.pop %v1444
    %v1446 = vmul.f32 %v1440, %v1445
    %v1447 = vld [vmem:[#allocation2 + $0xe0] sm:$0xff]
    %v1448 = vld [vmem:[#allocation2 + $0xe8] sm:$0xff]
    %v1449 = vld [vmem:[#allocation2 + $0xf0] sm:$0xff]
    %v1450 = vld [vmem:[#allocation2 + $0xf8] sm:$0xff]
    %1451 = vmatpush.msra.mxu0 %v390
    %1452 = vmatpush.msra.mxu0 %v386
    %1453 = vmatpush.msra.mxu0 %v382
    %1454 = vmatpush.msra.mxu0 %v378
    %1455 = vmatpush.msra.mxu0 %v374
    %1456 = vmatpush.msra.mxu0 %v370
    %1457 = vmatpush.msra.mxu0 %v366
    %1458 = vmatpush.msra.mxu0 %v362
    %1459 = vmatpush.msra.mxu0 %v358
    %1460 = vmatpush.msra.mxu0 %v354
    %1461 = vmatpush.msra.mxu0 %v350
    %1462 = vmatpush.msra.mxu0 %v346
    %1463 = vmatpush.msra.mxu0 %v342
    %1464 = vmatpush.msra.mxu0 %v338
    %1465 = vmatpush.msra.mxu0 %v334
    %1466 = vmatpush.msra.mxu0 %v330
    %1467 = vmatmul.f32.gmra.mxu0 %v1446
    %v1468 = vpop.f32.mrf.mxu0
    %v1469 = vadd.f32 0.0, %v1468
    %1470 = vdwg.mxu0
    %1471 = vmatpush.msra.mxu0 %v391
    %1472 = vmatpush.msra.mxu0 %v387
    %1473 = vmatpush.msra.mxu0 %v383
    %1474 = vmatpush.msra.mxu0 %v379
    %1475 = vmatpush.msra.mxu0 %v375
    %1476 = vmatpush.msra.mxu0 %v371
    %1477 = vmatpush.msra.mxu0 %v367
    %1478 = vmatpush.msra.mxu0 %v363
    %1479 = vmatpush.msra.mxu0 %v359
    %1480 = vmatpush.msra.mxu0 %v355
    %1481 = vmatpush.msra.mxu0 %v351
    %1482 = vmatpush.msra.mxu0 %v347
    %1483 = vmatpush.msra.mxu0 %v343
    %1484 = vmatpush.msra.mxu0 %v339
    %1485 = vmatpush.msra.mxu0 %v335
    %1486 = vmatpush.msra.mxu0 %v331
    %1487 = vmatmul.f32.gmra.mxu0 %v1446
    %v1488 = vpop.f32.mrf.mxu0
    %v1489 = vadd.f32 0.0, %v1488
    %1490 = vdwg.mxu0
    %1491 = vmatpush.msra.mxu0 %v392
    %1492 = vmatpush.msra.mxu0 %v388
    %1493 = vmatpush.msra.mxu0 %v384
    %1494 = vmatpush.msra.mxu0 %v380
    %1495 = vmatpush.msra.mxu0 %v376
    %1496 = vmatpush.msra.mxu0 %v372
    %1497 = vmatpush.msra.mxu0 %v368
    %1498 = vmatpush.msra.mxu0 %v364
    %1499 = vmatpush.msra.mxu0 %v360
    %1500 = vmatpush.msra.mxu0 %v356
    %1501 = vmatpush.msra.mxu0 %v352
    %1502 = vmatpush.msra.mxu0 %v348
    %1503 = vmatpush.msra.mxu0 %v344
    %1504 = vmatpush.msra.mxu0 %v340
    %1505 = vmatpush.msra.mxu0 %v336
    %1506 = vmatpush.msra.mxu0 %v332
    %1507 = vmatmul.f32.gmra.mxu0 %v1446
    %v1508 = vpop.f32.mrf.mxu0
    %v1509 = vadd.f32 0.0, %v1508
    %1510 = vdwg.mxu0
    %1511 = vmatpush.msra.mxu0 %v393
    %1512 = vmatpush.msra.mxu0 %v389
    %1513 = vmatpush.msra.mxu0 %v385
    %1514 = vmatpush.msra.mxu0 %v381
    %1515 = vmatpush.msra.mxu0 %v377
    %1516 = vmatpush.msra.mxu0 %v373
    %1517 = vmatpush.msra.mxu0 %v369
    %1518 = vmatpush.msra.mxu0 %v365
    %1519 = vmatpush.msra.mxu0 %v361
    %1520 = vmatpush.msra.mxu0 %v357
    %1521 = vmatpush.msra.mxu0 %v353
    %1522 = vmatpush.msra.mxu0 %v349
    %1523 = vmatpush.msra.mxu0 %v345
    %1524 = vmatpush.msra.mxu0 %v341
    %1525 = vmatpush.msra.mxu0 %v337
    %1526 = vmatpush.msra.mxu0 %v333
    %1527 = vmatmul.f32.gmra.mxu0 %v1446
    %v1528 = vpop.f32.mrf.mxu0
    %v1529 = vadd.f32 0.0, %v1528
    %1530 = vdwg.mxu0
    %v1531 = vadd.f32 %v1447, %v1469
    %v1532 = vadd.f32 %v1448, %v1489
    %v1533 = vadd.f32 %v1449, %v1509
    %v1534 = vadd.f32 %v1450, %v1529
    %v1535 = vxor.u32 %v1531, 2147483648
    %v1536 = vxor.u32 %v1532, 2147483648
    %v1537 = vxor.u32 %v1533, 2147483648
    %v1538 = vmul.f32 %v1535, 1.442695
    %v1539 = vpow.pop %v1538
    %v1540 = vmul.f32 %v1536, 1.442695
    %v1541 = vpow.pop %v1540
    %v1542 = vmul.f32 %v1537, 1.442695
    %v1543 = vpow.pop %v1542
    %v1544 = vadd.f32 %v1539, 1.0
    %v1545 = vadd.f32 %v1541, 1.0
    %v1546 = vadd.f32 %v1543, 1.0
    %v1547 = vrcp.pop %v1544
    %v1548 = vmul.f32 %v1544, %v1547
    %v1549 = vsub.f32 1.0, %v1548
    %v1550 = vmul.f32 %v1547, %v1549
    %v1551 = vadd.f32 %v1547, %v1550
    %vm1552 = vweird.f32 %v1544
    %vm1553 = vweird.f32 %v1547
    %vm1554 = vmor %vm1552, %vm1553
    %v1555 = vsel %vm1554, %v1547, %v1551
    %v1556 = vand.u32 2147483647, %v1544
    %vm1557 = vcmp.eq.f32.partialorder %v1556, 8.507059e+37
    %v1558 = vand.u32 %v1544, 2147483648
    %v1559 = vor.u32 1.1754944e-38, %v1558
    %v1560 = vsel %vm1557, %v1559, %v1555
    %v1561 = vmul.f32 1.0, %v1560
    %v1562 = vrcp.pop %v1545
    %v1563 = vmul.f32 %v1545, %v1562
    %v1564 = vsub.f32 1.0, %v1563
    %v1565 = vmul.f32 %v1562, %v1564
    %v1566 = vadd.f32 %v1562, %v1565
    %vm1567 = vweird.f32 %v1545
    %vm1568 = vweird.f32 %v1562
    %vm1569 = vmor %vm1567, %vm1568
    %v1570 = vsel %vm1569, %v1562, %v1566
    %v1571 = vand.u32 2147483647, %v1545
    %vm1572 = vcmp.eq.f32.partialorder %v1571, 8.507059e+37
    %v1573 = vand.u32 %v1545, 2147483648
    %v1574 = vor.u32 1.1754944e-38, %v1573
    %v1575 = vsel %vm1572, %v1574, %v1570
    %v1576 = vmul.f32 1.0, %v1575
    %v1577 = vrcp.pop %v1546
    %v1578 = vmul.f32 %v1546, %v1577
    %v1579 = vsub.f32 1.0, %v1578
    %v1580 = vmul.f32 %v1577, %v1579
    %v1581 = vadd.f32 %v1577, %v1580
    %vm1582 = vweird.f32 %v1546
    %vm1583 = vweird.f32 %v1577
    %vm1584 = vmor %vm1582, %vm1583
    %v1585 = vsel %vm1584, %v1577, %v1581
    %v1586 = vand.u32 2147483647, %v1546
    %vm1587 = vcmp.eq.f32.partialorder %v1586, 8.507059e+37
    %v1588 = vand.u32 %v1546, 2147483648
    %v1589 = vor.u32 1.1754944e-38, %v1588
    %v1590 = vsel %vm1587, %v1589, %v1585
    %v1591 = vmul.f32 1.0, %v1590
    %v1592 = vtanh.pop %v1534
    %v1593 = vmul.f32 %v1444, %v1576
    %v1594 = vmul.f32 %v1561, %v1592
    %v1595 = vadd.f32 %v1593, %v1594
    %v1596 = vtanh.pop %v1595
    %v1597 = vmul.f32 %v1591, %v1596
    %v1598 = vld [vmem:[#allocation8] sm:$0xff]
    %v1599 = vld [vmem:[#allocation8 + $0x8] sm:$0xff]
    %v1600 = vld [vmem:[#allocation8 + $0x10] sm:$0xff]
    %v1601 = vld [vmem:[#allocation8 + $0x18] sm:$0xff]
    %v1602 = vld [vmem:[#allocation8 + $0x20] sm:$0xff]
    %v1603 = vld [vmem:[#allocation8 + $0x28] sm:$0xff]
    %v1604 = vld [vmem:[#allocation8 + $0x30] sm:$0xff]
    %v1605 = vld [vmem:[#allocation8 + $0x38] sm:$0xff]
    %v1606 = vld [vmem:[#allocation8 + $0x40] sm:$0xff]
    %v1607 = vld [vmem:[#allocation8 + $0x48] sm:$0xff]
    %v1608 = vld [vmem:[#allocation8 + $0x50] sm:$0xff]
    %v1609 = vld [vmem:[#allocation8 + $0x58] sm:$0xff]
    %v1610 = vld [vmem:[#allocation8 + $0x60] sm:$0xff]
    %v1611 = vld [vmem:[#allocation8 + $0x68] sm:$0xff]
    %v1612 = vld [vmem:[#allocation8 + $0x70] sm:$0xff]
    %v1613 = vld [vmem:[#allocation8 + $0x78] sm:$0xff]
    %v1614 = vld [vmem:[%s5] sm:$0x1]
    %v1616 = vperm.slane %v1614, 0
    %1618 = vmatpush.msra.mxu0 %v1613
    %1619 = vmatpush.msra.mxu0 %v1612
    %1620 = vmatpush.msra.mxu0 %v1611
    %1621 = vmatpush.msra.mxu0 %v1610
    %1622 = vmatpush.msra.mxu0 %v1609
    %1623 = vmatpush.msra.mxu0 %v1608
    %1624 = vmatpush.msra.mxu0 %v1607
    %1625 = vmatpush.msra.mxu0 %v1606
    %1626 = vmatpush.msra.mxu0 %v1605
    %1627 = vmatpush.msra.mxu0 %v1604
    %1628 = vmatpush.msra.mxu0 %v1603
    %1629 = vmatpush.msra.mxu0 %v1602
    %1630 = vmatpush.msra.mxu0 %v1601
    %1631 = vmatpush.msra.mxu0 %v1600
    %1632 = vmatpush.msra.mxu0 %v1599
    %1633 = vmatpush.msra.mxu0 %v1598
    %1634 = vmatmul.f32.gmra.mxu0 %v1597
    %v1635 = vpop.f32.mrf.mxu0
    %v1636 = vadd.f32 %v1616, %v1635
    %1637 = vdwg.mxu0
    %1638 = vst [vmem:[#allocation10] sm:$0xff] %v1636
    // Predicated region
    $region34: #{tpu_custom_call.1} parent=1 // pred_check
      _
    $region35: #{tpu_custom_call.1} parent=1 // pred_check_branch
      %1640 = sbr.rel (0) target = $region37
    $region36: #{tpu_custom_call.1} parent=1 // pred_region
      %1642 = vsyncadd [#allocation7], 0
      %s1644 = sshll.u32 [#allocation10], 4
      %s1645 = int_to_ptr.vmem [resolvable:$true] %s1644
      %s1646 = sshll.u32 %s6, 4
      %s1647 = int_to_ptr.hbm [resolvable:$true] %s1646
      %1649 = dma.vmem_to_hbm [thread:$0]  %s1645, 128, %s1647, [#allocation7]
    $region37: #{tpu_custom_call.1} parent=1 // pred_fallthru
      _
    // Predicated region
    $region38: #{tpu_custom_call.1} parent=1 // pred_check
      _
    $region39: #{tpu_custom_call.1} parent=1 // pred_check_branch
      %1651 = sbr.rel (0) target = $region41
    $region40: #{tpu_custom_call.1} parent=1 // pred_region
      %1653 = dma.done [#allocation7], 128
    $region41: #{tpu_custom_call.1} parent=1 // pred_fallthru
      _
    %1654 = vsyncpa [#allocation6], 1
    %1655 = vsyncpa [#allocation9], 1
    %1656 = vsyncpa [#allocation7], 1
  %1657 = vsyncmov [#allocation4]
  %s1658 = vpop.sfrf %1657
  %p1659 = scmp.eq.s32.totalorder %s1658, 0
  %p1660 = pneg %p1659
  %1662 = shalt.err (%p1660)

</llo_original>
